<compile_context>
chip_gen: v5e
topology: v5e:2x2
jax: 0.10.0
libtpu: 0.0.40
codegen_flags: <defaults>
</compile_context>

<pallas_src>
import jax
import jax.numpy as jnp
from jax import lax
from jax.experimental import pallas as pl
from jax.experimental.pallas import tpu as pltpu

NUM_EDGES = 10  # self.num_edges in the torch module


def _graph_learning_kernel(scale_ref, pos_ref, post_ref, rand_ref, tri_ref,
                           idx_out_ref, attr_out_ref):
    # scale_ref: (1,)        SMEM, holds -1/eps^2 (precomputed in wrapper)
    # pos_ref  : (1, N, D)   full node positions of this graph (node-major)
    # post_ref : (1, D, TR)  transposed positions of this row stripe
    # rand_ref : (1, E, TR)  uniform randoms, lane-dense per edge slot
    # tri_ref  : (N, N)      lower-triangular ones (resident constant)
    # outputs  : (1, E, TR)  int32 indices / float32 edge attrs (lane-dense)
    N = pos_ref.shape[1]
    D = pos_ref.shape[2]
    E = rand_ref.shape[1]
    TR = post_ref.shape[2]

    scale = scale_ref[0]                       # -1 / eps^2
    row_start = pl.program_id(1) * TR          # global index of first stripe row

    pos_all = pos_ref[0]                       # (N, D)  target nodes (sublanes)
    pos_rows_t = post_ref[0]                   # (D, TR) stripe query rows (lanes)

    # ---- pairwise Euclidean distance, pure VPU (D == 3 -> MXU would be padding) ----
    # d2[k, i] = sum_d (pos_all[k, d] - pos_rows[i, d])^2
    d2 = jnp.zeros((N, TR), jnp.float32)
    for d in range(D):                                          # static unroll
        diff = pos_all[:, d:d + 1] - pos_rows_t[d:d + 1, :]     # (N,1)-(1,TR)->(N,TR)
        d2 = d2 + diff * diff
    cdists = jnp.sqrt(d2)                                       # (N, TR)

    kk = lax.broadcasted_iota(jnp.int32, (N, TR), 0)               # target node id
    ii = lax.broadcasted_iota(jnp.int32, (N, TR), 1) + row_start   # global row id

    # ---- W = exp(-cdists / eps^2), zero diagonal ----
    w = jnp.exp(cdists * scale)
    w = jnp.where(kk == ii, 0.0, w)

    # ---- softmax over targets (sublane axis). W in [0, 1] with zeroed diag,
    # so exp(W) <= e and the max-subtraction is value-identical / unnecessary. ----
    ex = jnp.exp(w)
    denom = jnp.sum(ex, axis=0, keepdims=True)                  # (1, TR)
    ws = ex * pl.reciprocal(denom, approx=True)                 # EUP reciprocal

    # ---- inclusive cumsum over targets on the MXU: ps[k,i] = sum_{m<=k} ws[m,i] ----
    ps = jnp.dot(tri_ref[...], ws, preferred_element_type=jnp.float32)  # (N, TR)

    # ---- fused searchsorted(left) + gather ----
    # Intervals (lo[k], hi[k]] partition (-1, 2]; exactly one bin contains each r.
    lo = pltpu.roll(ps, shift=1, axis=0)                        # lo[k] = ps[k-1]
    lo = jnp.where(kk == 0, -1.0, lo)
    hi = jnp.where(kk == N - 1, 2.0, ps)                        # clamp top bin (idx < N)

    for e in range(E):                                          # E == 10, static unroll
        r = rand_ref[0, e, :]                                   # (TR,) lane-dense
        sel = jnp.logical_and(hi >= r, lo < r)                  # (N, TR), one hit per col
        idx_out_ref[0, e, :] = jnp.sum(jnp.where(sel, kk, 0), axis=0)
        attr_out_ref[0, e, :] = jnp.sum(jnp.where(sel, w, 0.0), axis=0)


def graph_learning_layer(pos, rand, epsilon):
    """pos: (B, N, D) f32; rand: (B, N, NUM_EDGES) f32 in [0,1); epsilon: (1,) f32.

    Returns (edge_index (2, B*N*NUM_EDGES) int32, edge_attr (B*N*NUM_EDGES,) f32),
    matching torch_geometric Batch.from_data_list semantics for equal-sized graphs.
    """
    B, N, D = pos.shape
    E = rand.shape[-1]

    # Row-tile the query rows so the per-step working set stays small
    # (keeps v7x's 64 MiB VMEM happy at large N; also gives a 2nd parallel axis).
    TR = 256 if (N > 256 and N % 256 == 0) else N

    pos_t = jnp.swapaxes(pos, 1, 2)                 # (B, D, N)
    rand_t = jnp.swapaxes(rand, 1, 2)               # (B, E, N) lane-dense rows
    tri = (jnp.arange(N)[:, None] >= jnp.arange(N)[None, :]).astype(jnp.float32)
    scale = (-1.0 / (epsilon * epsilon)).astype(jnp.float32)    # (1,)  -1/eps^2

    idx_en, attr_en = pl.pallas_call(
        _graph_learning_kernel,
        out_shape=(
            jax.ShapeDtypeStruct((B, E, N), jnp.int32),
            jax.ShapeDtypeStruct((B, E, N), jnp.float32),
        ),
        grid_spec=pltpu.PrefetchScalarGridSpec(
            num_scalar_prefetch=0,
            grid=(B, N // TR),
            in_specs=[
                pl.BlockSpec(memory_space=pltpu.SMEM),                 # -1/eps^2 (1,)
                pl.BlockSpec((1, N, D), lambda b, r: (b, 0, 0)),       # pos (node-major)
                pl.BlockSpec((1, D, TR), lambda b, r: (b, 0, r)),      # pos^T stripe
                pl.BlockSpec((1, E, TR), lambda b, r: (b, 0, r)),      # randoms stripe
                pl.BlockSpec((N, N), lambda b, r: (0, 0)),             # lower-tri ones
            ],
            out_specs=[
                pl.BlockSpec((1, E, TR), lambda b, r: (b, 0, r)),
                pl.BlockSpec((1, E, TR), lambda b, r: (b, 0, r)),
            ],
        ),
        compiler_params=pltpu.CompilerParams(
            dimension_semantics=("parallel", "parallel"),
            vmem_limit_bytes=32 * 1024 * 1024,
        ),
    )(scale, pos, pos_t, rand_t, tri)

    # Back to torch's (node, edge-slot) flatten order, then batch-offset indices.
    idx = jnp.swapaxes(idx_en, 1, 2)                # (B, N, E)
    attr = jnp.swapaxes(attr_en, 1, 2)              # (B, N, E)

    offs = (jnp.arange(B, dtype=jnp.int32) * N)[:, None, None]          # (B,1,1)
    row_ref = jnp.broadcast_to(
        jnp.arange(N, dtype=jnp.int32)[None, :, None], (B, N, E)) + offs
    row_tgt = idx + offs
    edge_index = jnp.stack([row_ref.reshape(-1), row_tgt.reshape(-1)], axis=0)
    edge_attr = attr.reshape(-1)
    return edge_index, edge_attr


if __name__ == "__main__":
    B, N, D = 2, 16, 3   # 2 graphs, 16 nodes each, 3-D positions
    key = jax.random.PRNGKey(0)
    k_pos, k_rand = jax.random.split(key)

    pos = jax.random.normal(k_pos, (B, N, D), dtype=jnp.float32)
    # torch.rand(len(W), num_edges) drawn per graph -> (B, N, NUM_EDGES)
    rand = jax.random.uniform(k_rand, (B, N, NUM_EDGES), dtype=jnp.float32)
    # nn.Parameter(torch.ones(1)) -> deterministic init
    epsilon = jnp.ones((1,), dtype=jnp.float32)

    edge_index, edge_attr = graph_learning_layer(pos, rand, epsilon)
    jax.block_until_ready((edge_index, edge_attr))

    # ---- structural checks + W-gather consistency against a pure-JAX reference ----
    assert edge_index.shape == (2, B * N * NUM_EDGES)
    assert edge_attr.shape == (B * N * NUM_EDGES,)
    src, tgt = edge_index[0], edge_index[1]
    assert int(jnp.min(tgt)) >= 0 and int(jnp.max(tgt)) < B * N
    assert bool(jnp.all(src // N == tgt // N))        # edges stay inside their graph
    assert bool(jnp.all(jnp.isfinite(edge_attr))) and bool(jnp.all(edge_attr >= 0.0))

    diff = pos[:, :, None, :] - pos[:, None, :, :]                     # (B, N, N, D)
    cd = jnp.sqrt(jnp.sum(diff * diff, axis=-1))                       # (B, N, N)
    w_ref = jnp.exp(-cd / (epsilon[0] ** 2)) * (1.0 - jnp.eye(N, dtype=jnp.float32))
    gathered = w_ref[src // N, src % N, tgt % N]
    assert bool(jnp.allclose(edge_attr, gathered, atol=1e-4))

    print("KERNEL_OK")
</pallas_src>

<mosaic_0001>
module attributes {stable_mosaic.version = 11 : i64} {
  func.func @_graph_learning_kernel(%arg0: i32, %arg1: i32, %arg2: memref<1xf32, #tpu.memory_space<smem>>, %arg3: memref<1x16x3xf32, #tpu.memory_space<vmem>>, %arg4: memref<1x3x16xf32, #tpu.memory_space<vmem>>, %arg5: memref<1x10x16xf32, #tpu.memory_space<vmem>>, %arg6: memref<16x16xf32, #tpu.memory_space<vmem>>, %arg7: memref<1x10x16xi32, #tpu.memory_space<vmem>>, %arg8: memref<1x10x16xf32, #tpu.memory_space<vmem>>) attributes {dimension_semantics = [#tpu.dimension_semantics<parallel>, #tpu.dimension_semantics<parallel>], iteration_bounds = array<i64: 2, 1>, scalar_prefetch = 0 : i64, scratch_operands = 0 : i64, tpu.core_type = #tpu.core_type<tc>, window_params = [{transform_indices = @transform_0, window_bounds = array<i64: 1>}, {transform_indices = @transform_1, window_bounds = array<i64: 1, 16, 3>}, {transform_indices = @transform_2, window_bounds = array<i64: 1, 3, 16>}, {transform_indices = @transform_3, window_bounds = array<i64: 1, 10, 16>}, {pipeline_mode = #tpu.pipeline_mode<synchronous>, transform_indices = @transform_4, window_bounds = array<i64: 16, 16>}, {transform_indices = @transform_5, window_bounds = array<i64: 1, 10, 16>}, {transform_indices = @transform_6, window_bounds = array<i64: 1, 10, 16>}]} {
    %c0 = arith.constant 0 : index
    %0 = memref.load %arg2[%c0] : memref<1xf32, #tpu.memory_space<smem>>
    %c16_i32 = arith.constant 16 : i32
    %1 = arith.muli %arg1, %c16_i32 : i32
    %c0_0 = arith.constant 0 : index
    %c0_1 = arith.constant 0 : index
    %c0_2 = arith.constant 0 : index
    %2 = vector.load %arg3[%c0_0, %c0_1, %c0_2] : memref<1x16x3xf32, #tpu.memory_space<vmem>>, vector<1x16x3xf32>
    %3 = vector.shape_cast %2 : vector<1x16x3xf32> to vector<16x3xf32>
    %c0_3 = arith.constant 0 : index
    %c0_4 = arith.constant 0 : index
    %c0_5 = arith.constant 0 : index
    %4 = vector.load %arg4[%c0_3, %c0_4, %c0_5] : memref<1x3x16xf32, #tpu.memory_space<vmem>>, vector<1x3x16xf32>
    %5 = vector.shape_cast %4 : vector<1x3x16xf32> to vector<3x16xf32>
    %cst = arith.constant 0.000000e+00 : f32
    %6 = vector.broadcast %cst : f32 to vector<16x16xf32>
    %7 = vector.extract_strided_slice %3 {offsets = [0, 0], sizes = [16, 1], strides = [1, 1]} : vector<16x3xf32> to vector<16x1xf32>
    %8 = vector.extract_strided_slice %5 {offsets = [0, 0], sizes = [1, 16], strides = [1, 1]} : vector<3x16xf32> to vector<1x16xf32>
    %9 = vector.broadcast %7 : vector<16x1xf32> to vector<16x16xf32>
    %10 = vector.broadcast %8 : vector<1x16xf32> to vector<16x16xf32>
    %11 = arith.subf %9, %10 : vector<16x16xf32>
    %12 = arith.mulf %11, %11 : vector<16x16xf32>
    %13 = arith.addf %6, %12 : vector<16x16xf32>
    %14 = vector.extract_strided_slice %3 {offsets = [0, 1], sizes = [16, 1], strides = [1, 1]} : vector<16x3xf32> to vector<16x1xf32>
    %15 = vector.extract_strided_slice %5 {offsets = [1, 0], sizes = [1, 16], strides = [1, 1]} : vector<3x16xf32> to vector<1x16xf32>
    %16 = vector.broadcast %14 : vector<16x1xf32> to vector<16x16xf32>
    %17 = vector.broadcast %15 : vector<1x16xf32> to vector<16x16xf32>
    %18 = arith.subf %16, %17 : vector<16x16xf32>
    %19 = arith.mulf %18, %18 : vector<16x16xf32>
    %20 = arith.addf %13, %19 : vector<16x16xf32>
    %21 = vector.extract_strided_slice %3 {offsets = [0, 2], sizes = [16, 1], strides = [1, 1]} : vector<16x3xf32> to vector<16x1xf32>
    %22 = vector.extract_strided_slice %5 {offsets = [2, 0], sizes = [1, 16], strides = [1, 1]} : vector<3x16xf32> to vector<1x16xf32>
    %23 = vector.broadcast %21 : vector<16x1xf32> to vector<16x16xf32>
    %24 = vector.broadcast %22 : vector<1x16xf32> to vector<16x16xf32>
    %25 = arith.subf %23, %24 : vector<16x16xf32>
    %26 = arith.mulf %25, %25 : vector<16x16xf32>
    %27 = arith.addf %20, %26 : vector<16x16xf32>
    %28 = math.sqrt %27 : vector<16x16xf32>
    %29 = tpu.iota {dimensions = array<i32: 0>} : vector<16x16xi32>
    %30 = tpu.iota {dimensions = array<i32: 1>} : vector<16x16xi32>
    %31 = vector.broadcast %1 : i32 to vector<16x16xi32>
    %32 = arith.addi %30, %31 : vector<16x16xi32>
    %33 = vector.broadcast %0 : f32 to vector<16x16xf32>
    %34 = arith.mulf %28, %33 : vector<16x16xf32>
    %35 = math.exp %34 : vector<16x16xf32>
    %36 = arith.cmpi eq, %29, %32 : vector<16x16xi32>
    %cst_6 = arith.constant 0.000000e+00 : f32
    %37 = vector.broadcast %cst_6 : f32 to vector<16x16xf32>
    %38 = arith.select %36, %37, %35 : vector<16x16xi1>, vector<16x16xf32>
    %39 = math.exp %38 : vector<16x16xf32>
    %cst_7 = arith.constant dense<0.000000e+00> : vector<16xf32>
    %40 = vector.multi_reduction <add>, %39, %cst_7 [0] : vector<16x16xf32> to vector<16xf32>
    %41 = vector.shape_cast %40 : vector<16xf32> to vector<1x16xf32>
    %42 = tpu.reciprocal %41 {approx = true} : vector<1x16xf32> -> vector<1x16xf32>
    %43 = vector.broadcast %42 : vector<1x16xf32> to vector<16x16xf32>
    %44 = arith.mulf %39, %43 : vector<16x16xf32>
    %c0_8 = arith.constant 0 : index
    %c0_9 = arith.constant 0 : index
    %45 = vector.load %arg6[%c0_8, %c0_9] : memref<16x16xf32, #tpu.memory_space<vmem>>, vector<16x16xf32>
    %cst_10 = arith.constant dense<0.000000e+00> : vector<16x16xf32>
    %46 = tpu.matmul %45, %44, %cst_10 {dimension_numbers = #tpu.dot_dimension_numbers<[1], [0], [0], [1], [0, 0, 1, 1], [], []>} : vector<16x16xf32>, vector<16x16xf32>, vector<16x16xf32> -> vector<16x16xf32>
    %c1_i32 = arith.constant 1 : i32
    %47 = tpu.dynamic_rotate %46 by %c1_i32 dim 0 : vector<16x16xf32>, i32 -> vector<16x16xf32>
    %c0_i32 = arith.constant 0 : i32
    %48 = vector.broadcast %c0_i32 : i32 to vector<16x16xi32>
    %49 = arith.cmpi eq, %29, %48 : vector<16x16xi32>
    %cst_11 = arith.constant -1.000000e+00 : f32
    %50 = vector.broadcast %cst_11 : f32 to vector<16x16xf32>
    %51 = arith.select %49, %50, %47 : vector<16x16xi1>, vector<16x16xf32>
    %c15_i32 = arith.constant 15 : i32
    %52 = vector.broadcast %c15_i32 : i32 to vector<16x16xi32>
    %53 = arith.cmpi eq, %29, %52 : vector<16x16xi32>
    %cst_12 = arith.constant 2.000000e+00 : f32
    %54 = vector.broadcast %cst_12 : f32 to vector<16x16xf32>
    %55 = arith.select %53, %54, %46 : vector<16x16xi1>, vector<16x16xf32>
    %c0_13 = arith.constant 0 : index
    %c0_14 = arith.constant 0 : index
    %c0_15 = arith.constant 0 : index
    %56 = vector.load %arg5[%c0_13, %c0_14, %c0_15] : memref<1x10x16xf32, #tpu.memory_space<vmem>>, vector<1x1x16xf32>
    %57 = vector.shape_cast %56 : vector<1x1x16xf32> to vector<16xf32>
    %58 = vector.shape_cast %57 : vector<16xf32> to vector<1x16xf32>
    %59 = vector.broadcast %58 : vector<1x16xf32> to vector<16x16xf32>
    %60 = arith.cmpf oge, %55, %59 : vector<16x16xf32>
    %61 = vector.shape_cast %57 : vector<16xf32> to vector<1x16xf32>
    %62 = vector.broadcast %61 : vector<1x16xf32> to vector<16x16xf32>
    %63 = arith.cmpf olt, %51, %62 : vector<16x16xf32>
    %64 = arith.andi %60, %63 : vector<16x16xi1>
    %c0_i32_16 = arith.constant 0 : i32
    %65 = vector.broadcast %c0_i32_16 : i32 to vector<16x16xi32>
    %66 = arith.select %64, %29, %65 : vector<16x16xi1>, vector<16x16xi32>
    %cst_17 = arith.constant dense<0> : vector<16xi32>
    %67 = vector.multi_reduction <add>, %66, %cst_17 [0] : vector<16x16xi32> to vector<16xi32>
    %c0_18 = arith.constant 0 : index
    %c0_19 = arith.constant 0 : index
    %c0_20 = arith.constant 0 : index
    %68 = vector.load %arg7[%c0_18, %c0_19, %c0_20] : memref<1x10x16xi32, #tpu.memory_space<vmem>>, vector<1x1x16xi32>
    %69 = vector.shape_cast %68 : vector<1x1x16xi32> to vector<16xi32>
    %70 = vector.shape_cast %67 : vector<16xi32> to vector<1x1x16xi32>
    tpu.vector_store %arg7[%c0_18, %c0_19, %c0_20], %70 {strides = array<i32>} : memref<1x10x16xi32, #tpu.memory_space<vmem>>, vector<1x1x16xi32>,
    %cst_21 = arith.constant 0.000000e+00 : f32
    %71 = vector.broadcast %cst_21 : f32 to vector<16x16xf32>
    %72 = arith.select %64, %38, %71 : vector<16x16xi1>, vector<16x16xf32>
    %cst_22 = arith.constant dense<0.000000e+00> : vector<16xf32>
    %73 = vector.multi_reduction <add>, %72, %cst_22 [0] : vector<16x16xf32> to vector<16xf32>
    %c0_23 = arith.constant 0 : index
    %c0_24 = arith.constant 0 : index
    %c0_25 = arith.constant 0 : index
    %74 = vector.load %arg8[%c0_23, %c0_24, %c0_25] : memref<1x10x16xf32, #tpu.memory_space<vmem>>, vector<1x1x16xf32>
    %75 = vector.shape_cast %74 : vector<1x1x16xf32> to vector<16xf32>
    %76 = vector.shape_cast %73 : vector<16xf32> to vector<1x1x16xf32>
    tpu.vector_store %arg8[%c0_23, %c0_24, %c0_25], %76 {strides = array<i32>} : memref<1x10x16xf32, #tpu.memory_space<vmem>>, vector<1x1x16xf32>,
    %c0_26 = arith.constant 0 : index
    %c1 = arith.constant 1 : index
    %c0_27 = arith.constant 0 : index
    %77 = vector.load %arg5[%c0_26, %c1, %c0_27] : memref<1x10x16xf32, #tpu.memory_space<vmem>>, vector<1x1x16xf32>
    %78 = vector.shape_cast %77 : vector<1x1x16xf32> to vector<16xf32>
    %79 = vector.shape_cast %78 : vector<16xf32> to vector<1x16xf32>
    %80 = vector.broadcast %79 : vector<1x16xf32> to vector<16x16xf32>
    %81 = arith.cmpf oge, %55, %80 : vector<16x16xf32>
    %82 = vector.shape_cast %78 : vector<16xf32> to vector<1x16xf32>
    %83 = vector.broadcast %82 : vector<1x16xf32> to vector<16x16xf32>
    %84 = arith.cmpf olt, %51, %83 : vector<16x16xf32>
    %85 = arith.andi %81, %84 : vector<16x16xi1>
    %c0_i32_28 = arith.constant 0 : i32
    %86 = vector.broadcast %c0_i32_28 : i32 to vector<16x16xi32>
    %87 = arith.select %85, %29, %86 : vector<16x16xi1>, vector<16x16xi32>
    %cst_29 = arith.constant dense<0> : vector<16xi32>
    %88 = vector.multi_reduction <add>, %87, %cst_29 [0] : vector<16x16xi32> to vector<16xi32>
    %c0_30 = arith.constant 0 : index
    %c1_31 = arith.constant 1 : index
    %c0_32 = arith.constant 0 : index
    %89 = vector.load %arg7[%c0_30, %c1_31, %c0_32] : memref<1x10x16xi32, #tpu.memory_space<vmem>>, vector<1x1x16xi32>
    %90 = vector.shape_cast %89 : vector<1x1x16xi32> to vector<16xi32>
    %91 = vector.shape_cast %88 : vector<16xi32> to vector<1x1x16xi32>
    tpu.vector_store %arg7[%c0_30, %c1_31, %c0_32], %91 {strides = array<i32>} : memref<1x10x16xi32, #tpu.memory_space<vmem>>, vector<1x1x16xi32>,
    %cst_33 = arith.constant 0.000000e+00 : f32
    %92 = vector.broadcast %cst_33 : f32 to vector<16x16xf32>
    %93 = arith.select %85, %38, %92 : vector<16x16xi1>, vector<16x16xf32>
    %cst_34 = arith.constant dense<0.000000e+00> : vector<16xf32>
    %94 = vector.multi_reduction <add>, %93, %cst_34 [0] : vector<16x16xf32> to vector<16xf32>
    %c0_35 = arith.constant 0 : index
    %c1_36 = arith.constant 1 : index
    %c0_37 = arith.constant 0 : index
    %95 = vector.load %arg8[%c0_35, %c1_36, %c0_37] : memref<1x10x16xf32, #tpu.memory_space<vmem>>, vector<1x1x16xf32>
    %96 = vector.shape_cast %95 : vector<1x1x16xf32> to vector<16xf32>
    %97 = vector.shape_cast %94 : vector<16xf32> to vector<1x1x16xf32>
    tpu.vector_store %arg8[%c0_35, %c1_36, %c0_37], %97 {strides = array<i32>} : memref<1x10x16xf32, #tpu.memory_space<vmem>>, vector<1x1x16xf32>,
    %c0_38 = arith.constant 0 : index
    %c2 = arith.constant 2 : index
    %c0_39 = arith.constant 0 : index
    %98 = vector.load %arg5[%c0_38, %c2, %c0_39] : memref<1x10x16xf32, #tpu.memory_space<vmem>>, vector<1x1x16xf32>
    %99 = vector.shape_cast %98 : vector<1x1x16xf32> to vector<16xf32>
    %100 = vector.shape_cast %99 : vector<16xf32> to vector<1x16xf32>
    %101 = vector.broadcast %100 : vector<1x16xf32> to vector<16x16xf32>
    %102 = arith.cmpf oge, %55, %101 : vector<16x16xf32>
    %103 = vector.shape_cast %99 : vector<16xf32> to vector<1x16xf32>
    %104 = vector.broadcast %103 : vector<1x16xf32> to vector<16x16xf32>
    %105 = arith.cmpf olt, %51, %104 : vector<16x16xf32>
    %106 = arith.andi %102, %105 : vector<16x16xi1>
    %c0_i32_40 = arith.constant 0 : i32
    %107 = vector.broadcast %c0_i32_40 : i32 to vector<16x16xi32>
    %108 = arith.select %106, %29, %107 : vector<16x16xi1>, vector<16x16xi32>
    %cst_41 = arith.constant dense<0> : vector<16xi32>
    %109 = vector.multi_reduction <add>, %108, %cst_41 [0] : vector<16x16xi32> to vector<16xi32>
    %c0_42 = arith.constant 0 : index
    %c2_43 = arith.constant 2 : index
    %c0_44 = arith.constant 0 : index
    %110 = vector.load %arg7[%c0_42, %c2_43, %c0_44] : memref<1x10x16xi32, #tpu.memory_space<vmem>>, vector<1x1x16xi32>
    %111 = vector.shape_cast %110 : vector<1x1x16xi32> to vector<16xi32>
    %112 = vector.shape_cast %109 : vector<16xi32> to vector<1x1x16xi32>
    tpu.vector_store %arg7[%c0_42, %c2_43, %c0_44], %112 {strides = array<i32>} : memref<1x10x16xi32, #tpu.memory_space<vmem>>, vector<1x1x16xi32>,
    %cst_45 = arith.constant 0.000000e+00 : f32
    %113 = vector.broadcast %cst_45 : f32 to vector<16x16xf32>
    %114 = arith.select %106, %38, %113 : vector<16x16xi1>, vector<16x16xf32>
    %cst_46 = arith.constant dense<0.000000e+00> : vector<16xf32>
    %115 = vector.multi_reduction <add>, %114, %cst_46 [0] : vector<16x16xf32> to vector<16xf32>
    %c0_47 = arith.constant 0 : index
    %c2_48 = arith.constant 2 : index
    %c0_49 = arith.constant 0 : index
    %116 = vector.load %arg8[%c0_47, %c2_48, %c0_49] : memref<1x10x16xf32, #tpu.memory_space<vmem>>, vector<1x1x16xf32>
    %117 = vector.shape_cast %116 : vector<1x1x16xf32> to vector<16xf32>
    %118 = vector.shape_cast %115 : vector<16xf32> to vector<1x1x16xf32>
    tpu.vector_store %arg8[%c0_47, %c2_48, %c0_49], %118 {strides = array<i32>} : memref<1x10x16xf32, #tpu.memory_space<vmem>>, vector<1x1x16xf32>,
    %c0_50 = arith.constant 0 : index
    %c3 = arith.constant 3 : index
    %c0_51 = arith.constant 0 : index
    %119 = vector.load %arg5[%c0_50, %c3, %c0_51] : memref<1x10x16xf32, #tpu.memory_space<vmem>>, vector<1x1x16xf32>
    %120 = vector.shape_cast %119 : vector<1x1x16xf32> to vector<16xf32>
    %121 = vector.shape_cast %120 : vector<16xf32> to vector<1x16xf32>
    %122 = vector.broadcast %121 : vector<1x16xf32> to vector<16x16xf32>
    %123 = arith.cmpf oge, %55, %122 : vector<16x16xf32>
    %124 = vector.shape_cast %120 : vector<16xf32> to vector<1x16xf32>
    %125 = vector.broadcast %124 : vector<1x16xf32> to vector<16x16xf32>
    %126 = arith.cmpf olt, %51, %125 : vector<16x16xf32>
    %127 = arith.andi %123, %126 : vector<16x16xi1>
    %c0_i32_52 = arith.constant 0 : i32
    %128 = vector.broadcast %c0_i32_52 : i32 to vector<16x16xi32>
    %129 = arith.select %127, %29, %128 : vector<16x16xi1>, vector<16x16xi32>
    %cst_53 = arith.constant dense<0> : vector<16xi32>
    %130 = vector.multi_reduction <add>, %129, %cst_53 [0] : vector<16x16xi32> to vector<16xi32>
    %c0_54 = arith.constant 0 : index
    %c3_55 = arith.constant 3 : index
    %c0_56 = arith.constant 0 : index
    %131 = vector.load %arg7[%c0_54, %c3_55, %c0_56] : memref<1x10x16xi32, #tpu.memory_space<vmem>>, vector<1x1x16xi32>
    %132 = vector.shape_cast %131 : vector<1x1x16xi32> to vector<16xi32>
    %133 = vector.shape_cast %130 : vector<16xi32> to vector<1x1x16xi32>
    tpu.vector_store %arg7[%c0_54, %c3_55, %c0_56], %133 {strides = array<i32>} : memref<1x10x16xi32, #tpu.memory_space<vmem>>, vector<1x1x16xi32>,
    %cst_57 = arith.constant 0.000000e+00 : f32
    %134 = vector.broadcast %cst_57 : f32 to vector<16x16xf32>
    %135 = arith.select %127, %38, %134 : vector<16x16xi1>, vector<16x16xf32>
    %cst_58 = arith.constant dense<0.000000e+00> : vector<16xf32>
    %136 = vector.multi_reduction <add>, %135, %cst_58 [0] : vector<16x16xf32> to vector<16xf32>
    %c0_59 = arith.constant 0 : index
    %c3_60 = arith.constant 3 : index
    %c0_61 = arith.constant 0 : index
    %137 = vector.load %arg8[%c0_59, %c3_60, %c0_61] : memref<1x10x16xf32, #tpu.memory_space<vmem>>, vector<1x1x16xf32>
    %138 = vector.shape_cast %137 : vector<1x1x16xf32> to vector<16xf32>
    %139 = vector.shape_cast %136 : vector<16xf32> to vector<1x1x16xf32>
    tpu.vector_store %arg8[%c0_59, %c3_60, %c0_61], %139 {strides = array<i32>} : memref<1x10x16xf32, #tpu.memory_space<vmem>>, vector<1x1x16xf32>,
    %c0_62 = arith.constant 0 : index
    %c4 = arith.constant 4 : index
    %c0_63 = arith.constant 0 : index
    %140 = vector.load %arg5[%c0_62, %c4, %c0_63] : memref<1x10x16xf32, #tpu.memory_space<vmem>>, vector<1x1x16xf32>
    %141 = vector.shape_cast %140 : vector<1x1x16xf32> to vector<16xf32>
    %142 = vector.shape_cast %141 : vector<16xf32> to vector<1x16xf32>
    %143 = vector.broadcast %142 : vector<1x16xf32> to vector<16x16xf32>
    %144 = arith.cmpf oge, %55, %143 : vector<16x16xf32>
    %145 = vector.shape_cast %141 : vector<16xf32> to vector<1x16xf32>
    %146 = vector.broadcast %145 : vector<1x16xf32> to vector<16x16xf32>
    %147 = arith.cmpf olt, %51, %146 : vector<16x16xf32>
    %148 = arith.andi %144, %147 : vector<16x16xi1>
    %c0_i32_64 = arith.constant 0 : i32
    %149 = vector.broadcast %c0_i32_64 : i32 to vector<16x16xi32>
    %150 = arith.select %148, %29, %149 : vector<16x16xi1>, vector<16x16xi32>
    %cst_65 = arith.constant dense<0> : vector<16xi32>
    %151 = vector.multi_reduction <add>, %150, %cst_65 [0] : vector<16x16xi32> to vector<16xi32>
    %c0_66 = arith.constant 0 : index
    %c4_67 = arith.constant 4 : index
    %c0_68 = arith.constant 0 : index
    %152 = vector.load %arg7[%c0_66, %c4_67, %c0_68] : memref<1x10x16xi32, #tpu.memory_space<vmem>>, vector<1x1x16xi32>
    %153 = vector.shape_cast %152 : vector<1x1x16xi32> to vector<16xi32>
    %154 = vector.shape_cast %151 : vector<16xi32> to vector<1x1x16xi32>
    tpu.vector_store %arg7[%c0_66, %c4_67, %c0_68], %154 {strides = array<i32>} : memref<1x10x16xi32, #tpu.memory_space<vmem>>, vector<1x1x16xi32>,
    %cst_69 = arith.constant 0.000000e+00 : f32
    %155 = vector.broadcast %cst_69 : f32 to vector<16x16xf32>
    %156 = arith.select %148, %38, %155 : vector<16x16xi1>, vector<16x16xf32>
    %cst_70 = arith.constant dense<0.000000e+00> : vector<16xf32>
    %157 = vector.multi_reduction <add>, %156, %cst_70 [0] : vector<16x16xf32> to vector<16xf32>
    %c0_71 = arith.constant 0 : index
    %c4_72 = arith.constant 4 : index
    %c0_73 = arith.constant 0 : index
    %158 = vector.load %arg8[%c0_71, %c4_72, %c0_73] : memref<1x10x16xf32, #tpu.memory_space<vmem>>, vector<1x1x16xf32>
    %159 = vector.shape_cast %158 : vector<1x1x16xf32> to vector<16xf32>
    %160 = vector.shape_cast %157 : vector<16xf32> to vector<1x1x16xf32>
    tpu.vector_store %arg8[%c0_71, %c4_72, %c0_73], %160 {strides = array<i32>} : memref<1x10x16xf32, #tpu.memory_space<vmem>>, vector<1x1x16xf32>,
    %c0_74 = arith.constant 0 : index
    %c5 = arith.constant 5 : index
    %c0_75 = arith.constant 0 : index
    %161 = vector.load %arg5[%c0_74, %c5, %c0_75] : memref<1x10x16xf32, #tpu.memory_space<vmem>>, vector<1x1x16xf32>
    %162 = vector.shape_cast %161 : vector<1x1x16xf32> to vector<16xf32>
    %163 = vector.shape_cast %162 : vector<16xf32> to vector<1x16xf32>
    %164 = vector.broadcast %163 : vector<1x16xf32> to vector<16x16xf32>
    %165 = arith.cmpf oge, %55, %164 : vector<16x16xf32>
    %166 = vector.shape_cast %162 : vector<16xf32> to vector<1x16xf32>
    %167 = vector.broadcast %166 : vector<1x16xf32> to vector<16x16xf32>
    %168 = arith.cmpf olt, %51, %167 : vector<16x16xf32>
    %169 = arith.andi %165, %168 : vector<16x16xi1>
    %c0_i32_76 = arith.constant 0 : i32
    %170 = vector.broadcast %c0_i32_76 : i32 to vector<16x16xi32>
    %171 = arith.select %169, %29, %170 : vector<16x16xi1>, vector<16x16xi32>
    %cst_77 = arith.constant dense<0> : vector<16xi32>
    %172 = vector.multi_reduction <add>, %171, %cst_77 [0] : vector<16x16xi32> to vector<16xi32>
    %c0_78 = arith.constant 0 : index
    %c5_79 = arith.constant 5 : index
    %c0_80 = arith.constant 0 : index
    %173 = vector.load %arg7[%c0_78, %c5_79, %c0_80] : memref<1x10x16xi32, #tpu.memory_space<vmem>>, vector<1x1x16xi32>
    %174 = vector.shape_cast %173 : vector<1x1x16xi32> to vector<16xi32>
    %175 = vector.shape_cast %172 : vector<16xi32> to vector<1x1x16xi32>
    tpu.vector_store %arg7[%c0_78, %c5_79, %c0_80], %175 {strides = array<i32>} : memref<1x10x16xi32, #tpu.memory_space<vmem>>, vector<1x1x16xi32>,
    %cst_81 = arith.constant 0.000000e+00 : f32
    %176 = vector.broadcast %cst_81 : f32 to vector<16x16xf32>
    %177 = arith.select %169, %38, %176 : vector<16x16xi1>, vector<16x16xf32>
    %cst_82 = arith.constant dense<0.000000e+00> : vector<16xf32>
    %178 = vector.multi_reduction <add>, %177, %cst_82 [0] : vector<16x16xf32> to vector<16xf32>
    %c0_83 = arith.constant 0 : index
    %c5_84 = arith.constant 5 : index
    %c0_85 = arith.constant 0 : index
    %179 = vector.load %arg8[%c0_83, %c5_84, %c0_85] : memref<1x10x16xf32, #tpu.memory_space<vmem>>, vector<1x1x16xf32>
    %180 = vector.shape_cast %179 : vector<1x1x16xf32> to vector<16xf32>
    %181 = vector.shape_cast %178 : vector<16xf32> to vector<1x1x16xf32>
    tpu.vector_store %arg8[%c0_83, %c5_84, %c0_85], %181 {strides = array<i32>} : memref<1x10x16xf32, #tpu.memory_space<vmem>>, vector<1x1x16xf32>,
    %c0_86 = arith.constant 0 : index
    %c6 = arith.constant 6 : index
    %c0_87 = arith.constant 0 : index
    %182 = vector.load %arg5[%c0_86, %c6, %c0_87] : memref<1x10x16xf32, #tpu.memory_space<vmem>>, vector<1x1x16xf32>
    %183 = vector.shape_cast %182 : vector<1x1x16xf32> to vector<16xf32>
    %184 = vector.shape_cast %183 : vector<16xf32> to vector<1x16xf32>
    %185 = vector.broadcast %184 : vector<1x16xf32> to vector<16x16xf32>
    %186 = arith.cmpf oge, %55, %185 : vector<16x16xf32>
    %187 = vector.shape_cast %183 : vector<16xf32> to vector<1x16xf32>
    %188 = vector.broadcast %187 : vector<1x16xf32> to vector<16x16xf32>
    %189 = arith.cmpf olt, %51, %188 : vector<16x16xf32>
    %190 = arith.andi %186, %189 : vector<16x16xi1>
    %c0_i32_88 = arith.constant 0 : i32
    %191 = vector.broadcast %c0_i32_88 : i32 to vector<16x16xi32>
    %192 = arith.select %190, %29, %191 : vector<16x16xi1>, vector<16x16xi32>
    %cst_89 = arith.constant dense<0> : vector<16xi32>
    %193 = vector.multi_reduction <add>, %192, %cst_89 [0] : vector<16x16xi32> to vector<16xi32>
    %c0_90 = arith.constant 0 : index
    %c6_91 = arith.constant 6 : index
    %c0_92 = arith.constant 0 : index
    %194 = vector.load %arg7[%c0_90, %c6_91, %c0_92] : memref<1x10x16xi32, #tpu.memory_space<vmem>>, vector<1x1x16xi32>
    %195 = vector.shape_cast %194 : vector<1x1x16xi32> to vector<16xi32>
    %196 = vector.shape_cast %193 : vector<16xi32> to vector<1x1x16xi32>
    tpu.vector_store %arg7[%c0_90, %c6_91, %c0_92], %196 {strides = array<i32>} : memref<1x10x16xi32, #tpu.memory_space<vmem>>, vector<1x1x16xi32>,
    %cst_93 = arith.constant 0.000000e+00 : f32
    %197 = vector.broadcast %cst_93 : f32 to vector<16x16xf32>
    %198 = arith.select %190, %38, %197 : vector<16x16xi1>, vector<16x16xf32>
    %cst_94 = arith.constant dense<0.000000e+00> : vector<16xf32>
    %199 = vector.multi_reduction <add>, %198, %cst_94 [0] : vector<16x16xf32> to vector<16xf32>
    %c0_95 = arith.constant 0 : index
    %c6_96 = arith.constant 6 : index
    %c0_97 = arith.constant 0 : index
    %200 = vector.load %arg8[%c0_95, %c6_96, %c0_97] : memref<1x10x16xf32, #tpu.memory_space<vmem>>, vector<1x1x16xf32>
    %201 = vector.shape_cast %200 : vector<1x1x16xf32> to vector<16xf32>
    %202 = vector.shape_cast %199 : vector<16xf32> to vector<1x1x16xf32>
    tpu.vector_store %arg8[%c0_95, %c6_96, %c0_97], %202 {strides = array<i32>} : memref<1x10x16xf32, #tpu.memory_space<vmem>>, vector<1x1x16xf32>,
    %c0_98 = arith.constant 0 : index
    %c7 = arith.constant 7 : index
    %c0_99 = arith.constant 0 : index
    %203 = vector.load %arg5[%c0_98, %c7, %c0_99] : memref<1x10x16xf32, #tpu.memory_space<vmem>>, vector<1x1x16xf32>
    %204 = vector.shape_cast %203 : vector<1x1x16xf32> to vector<16xf32>
    %205 = vector.shape_cast %204 : vector<16xf32> to vector<1x16xf32>
    %206 = vector.broadcast %205 : vector<1x16xf32> to vector<16x16xf32>
    %207 = arith.cmpf oge, %55, %206 : vector<16x16xf32>
    %208 = vector.shape_cast %204 : vector<16xf32> to vector<1x16xf32>
    %209 = vector.broadcast %208 : vector<1x16xf32> to vector<16x16xf32>
    %210 = arith.cmpf olt, %51, %209 : vector<16x16xf32>
    %211 = arith.andi %207, %210 : vector<16x16xi1>
    %c0_i32_100 = arith.constant 0 : i32
    %212 = vector.broadcast %c0_i32_100 : i32 to vector<16x16xi32>
    %213 = arith.select %211, %29, %212 : vector<16x16xi1>, vector<16x16xi32>
    %cst_101 = arith.constant dense<0> : vector<16xi32>
    %214 = vector.multi_reduction <add>, %213, %cst_101 [0] : vector<16x16xi32> to vector<16xi32>
    %c0_102 = arith.constant 0 : index
    %c7_103 = arith.constant 7 : index
    %c0_104 = arith.constant 0 : index
    %215 = vector.load %arg7[%c0_102, %c7_103, %c0_104] : memref<1x10x16xi32, #tpu.memory_space<vmem>>, vector<1x1x16xi32>
    %216 = vector.shape_cast %215 : vector<1x1x16xi32> to vector<16xi32>
    %217 = vector.shape_cast %214 : vector<16xi32> to vector<1x1x16xi32>
    tpu.vector_store %arg7[%c0_102, %c7_103, %c0_104], %217 {strides = array<i32>} : memref<1x10x16xi32, #tpu.memory_space<vmem>>, vector<1x1x16xi32>,
    %cst_105 = arith.constant 0.000000e+00 : f32
    %218 = vector.broadcast %cst_105 : f32 to vector<16x16xf32>
    %219 = arith.select %211, %38, %218 : vector<16x16xi1>, vector<16x16xf32>
    %cst_106 = arith.constant dense<0.000000e+00> : vector<16xf32>
    %220 = vector.multi_reduction <add>, %219, %cst_106 [0] : vector<16x16xf32> to vector<16xf32>
    %c0_107 = arith.constant 0 : index
    %c7_108 = arith.constant 7 : index
    %c0_109 = arith.constant 0 : index
    %221 = vector.load %arg8[%c0_107, %c7_108, %c0_109] : memref<1x10x16xf32, #tpu.memory_space<vmem>>, vector<1x1x16xf32>
    %222 = vector.shape_cast %221 : vector<1x1x16xf32> to vector<16xf32>
    %223 = vector.shape_cast %220 : vector<16xf32> to vector<1x1x16xf32>
    tpu.vector_store %arg8[%c0_107, %c7_108, %c0_109], %223 {strides = array<i32>} : memref<1x10x16xf32, #tpu.memory_space<vmem>>, vector<1x1x16xf32>,
    %c0_110 = arith.constant 0 : index
    %c8 = arith.constant 8 : index
    %c0_111 = arith.constant 0 : index
    %224 = vector.load %arg5[%c0_110, %c8, %c0_111] : memref<1x10x16xf32, #tpu.memory_space<vmem>>, vector<1x1x16xf32>
    %225 = vector.shape_cast %224 : vector<1x1x16xf32> to vector<16xf32>
    %226 = vector.shape_cast %225 : vector<16xf32> to vector<1x16xf32>
    %227 = vector.broadcast %226 : vector<1x16xf32> to vector<16x16xf32>
    %228 = arith.cmpf oge, %55, %227 : vector<16x16xf32>
    %229 = vector.shape_cast %225 : vector<16xf32> to vector<1x16xf32>
    %230 = vector.broadcast %229 : vector<1x16xf32> to vector<16x16xf32>
    %231 = arith.cmpf olt, %51, %230 : vector<16x16xf32>
    %232 = arith.andi %228, %231 : vector<16x16xi1>
    %c0_i32_112 = arith.constant 0 : i32
    %233 = vector.broadcast %c0_i32_112 : i32 to vector<16x16xi32>
    %234 = arith.select %232, %29, %233 : vector<16x16xi1>, vector<16x16xi32>
    %cst_113 = arith.constant dense<0> : vector<16xi32>
    %235 = vector.multi_reduction <add>, %234, %cst_113 [0] : vector<16x16xi32> to vector<16xi32>
    %c0_114 = arith.constant 0 : index
    %c8_115 = arith.constant 8 : index
    %c0_116 = arith.constant 0 : index
    %236 = vector.load %arg7[%c0_114, %c8_115, %c0_116] : memref<1x10x16xi32, #tpu.memory_space<vmem>>, vector<1x1x16xi32>
    %237 = vector.shape_cast %236 : vector<1x1x16xi32> to vector<16xi32>
    %238 = vector.shape_cast %235 : vector<16xi32> to vector<1x1x16xi32>
    tpu.vector_store %arg7[%c0_114, %c8_115, %c0_116], %238 {strides = array<i32>} : memref<1x10x16xi32, #tpu.memory_space<vmem>>, vector<1x1x16xi32>,
    %cst_117 = arith.constant 0.000000e+00 : f32
    %239 = vector.broadcast %cst_117 : f32 to vector<16x16xf32>
    %240 = arith.select %232, %38, %239 : vector<16x16xi1>, vector<16x16xf32>
    %cst_118 = arith.constant dense<0.000000e+00> : vector<16xf32>
    %241 = vector.multi_reduction <add>, %240, %cst_118 [0] : vector<16x16xf32> to vector<16xf32>
    %c0_119 = arith.constant 0 : index
    %c8_120 = arith.constant 8 : index
    %c0_121 = arith.constant 0 : index
    %242 = vector.load %arg8[%c0_119, %c8_120, %c0_121] : memref<1x10x16xf32, #tpu.memory_space<vmem>>, vector<1x1x16xf32>
    %243 = vector.shape_cast %242 : vector<1x1x16xf32> to vector<16xf32>
    %244 = vector.shape_cast %241 : vector<16xf32> to vector<1x1x16xf32>
    tpu.vector_store %arg8[%c0_119, %c8_120, %c0_121], %244 {strides = array<i32>} : memref<1x10x16xf32, #tpu.memory_space<vmem>>, vector<1x1x16xf32>,
    %c0_122 = arith.constant 0 : index
    %c9 = arith.constant 9 : index
    %c0_123 = arith.constant 0 : index
    %245 = vector.load %arg5[%c0_122, %c9, %c0_123] : memref<1x10x16xf32, #tpu.memory_space<vmem>>, vector<1x1x16xf32>
    %246 = vector.shape_cast %245 : vector<1x1x16xf32> to vector<16xf32>
    %247 = vector.shape_cast %246 : vector<16xf32> to vector<1x16xf32>
    %248 = vector.broadcast %247 : vector<1x16xf32> to vector<16x16xf32>
    %249 = arith.cmpf oge, %55, %248 : vector<16x16xf32>
    %250 = vector.shape_cast %246 : vector<16xf32> to vector<1x16xf32>
    %251 = vector.broadcast %250 : vector<1x16xf32> to vector<16x16xf32>
    %252 = arith.cmpf olt, %51, %251 : vector<16x16xf32>
    %253 = arith.andi %249, %252 : vector<16x16xi1>
    %c0_i32_124 = arith.constant 0 : i32
    %254 = vector.broadcast %c0_i32_124 : i32 to vector<16x16xi32>
    %255 = arith.select %253, %29, %254 : vector<16x16xi1>, vector<16x16xi32>
    %cst_125 = arith.constant dense<0> : vector<16xi32>
    %256 = vector.multi_reduction <add>, %255, %cst_125 [0] : vector<16x16xi32> to vector<16xi32>
    %c0_126 = arith.constant 0 : index
    %c9_127 = arith.constant 9 : index
    %c0_128 = arith.constant 0 : index
    %257 = vector.load %arg7[%c0_126, %c9_127, %c0_128] : memref<1x10x16xi32, #tpu.memory_space<vmem>>, vector<1x1x16xi32>
    %258 = vector.shape_cast %257 : vector<1x1x16xi32> to vector<16xi32>
    %259 = vector.shape_cast %256 : vector<16xi32> to vector<1x1x16xi32>
    tpu.vector_store %arg7[%c0_126, %c9_127, %c0_128], %259 {strides = array<i32>} : memref<1x10x16xi32, #tpu.memory_space<vmem>>, vector<1x1x16xi32>,
    %cst_129 = arith.constant 0.000000e+00 : f32
    %260 = vector.broadcast %cst_129 : f32 to vector<16x16xf32>
    %261 = arith.select %253, %38, %260 : vector<16x16xi1>, vector<16x16xf32>
    %cst_130 = arith.constant dense<0.000000e+00> : vector<16xf32>
    %262 = vector.multi_reduction <add>, %261, %cst_130 [0] : vector<16x16xf32> to vector<16xf32>
    %c0_131 = arith.constant 0 : index
    %c9_132 = arith.constant 9 : index
    %c0_133 = arith.constant 0 : index
    %263 = vector.load %arg8[%c0_131, %c9_132, %c0_133] : memref<1x10x16xf32, #tpu.memory_space<vmem>>, vector<1x1x16xf32>
    %264 = vector.shape_cast %263 : vector<1x1x16xf32> to vector<16xf32>
    %265 = vector.shape_cast %262 : vector<16xf32> to vector<1x1x16xf32>
    tpu.vector_store %arg8[%c0_131, %c9_132, %c0_133], %265 {strides = array<i32>} : memref<1x10x16xf32, #tpu.memory_space<vmem>>, vector<1x1x16xf32>,
    return
  }
  func.func @transform_0(%arg0: i32, %arg1: i32) -> i32 {
    %c0_i32 = arith.constant 0 : i32
    %c0_i32_0 = arith.constant 0 : i32
    return %c0_i32 : i32
  }
  func.func @transform_1(%arg0: i32, %arg1: i32) -> (i32, i32, i32) {
    %c0_i32 = arith.constant 0 : i32
    %c0_i32_0 = arith.constant 0 : i32
    %c0_i32_1 = arith.constant 0 : i32
    return %arg0, %c0_i32, %c0_i32_0 : i32, i32, i32
  }
  func.func @transform_2(%arg0: i32, %arg1: i32) -> (i32, i32, i32) {
    %c0_i32 = arith.constant 0 : i32
    %c0_i32_0 = arith.constant 0 : i32
    return %arg0, %c0_i32, %arg1 : i32, i32, i32
  }
  func.func @transform_3(%arg0: i32, %arg1: i32) -> (i32, i32, i32) {
    %c0_i32 = arith.constant 0 : i32
    %c0_i32_0 = arith.constant 0 : i32
    return %arg0, %c0_i32, %arg1 : i32, i32, i32
  }
  func.func @transform_4(%arg0: i32, %arg1: i32) -> (i32, i32) {
    %c0_i32 = arith.constant 0 : i32
    %c0_i32_0 = arith.constant 0 : i32
    %c0_i32_1 = arith.constant 0 : i32
    return %c0_i32, %c0_i32_0 : i32, i32
  }
  func.func @transform_5(%arg0: i32, %arg1: i32) -> (i32, i32, i32) {
    %c0_i32 = arith.constant 0 : i32
    %c0_i32_0 = arith.constant 0 : i32
    return %arg0, %c0_i32, %arg1 : i32, i32, i32
  }
  func.func @transform_6(%arg0: i32, %arg1: i32) -> (i32, i32, i32) {
    %c0_i32 = arith.constant 0 : i32
    %c0_i32_0 = arith.constant 0 : i32
    return %arg0, %c0_i32, %arg1 : i32, i32, i32
  }
}

</mosaic_0001>

<llo_original>
// kernel: tpu_custom_call.1
$region0: #{tpu_custom_call.1}
  #allocation0 [shape = 'u32[]', space=smem, size = 0x4, offset = 0x4, fixed_abs, tag = 'smem constant byte address 0x4 - core index']
  #allocation1 [shape = 'u32[72,128]{1,0:T(1,128)}', space=vmem, size = 0x9000, scoped, tag = 'internal scratch']
  #allocation2 [shape = 'f32[1]{0:T(128)S(6)}', space=smem, size = 0x200, scoped, tag = 'scoped memory for tpu_custom_call.1']
  %s0 = inlined_call_operand.<no memory space> [shape: f32[1], index: 0, kind: input, shape index: {}]
  %s1 = inlined_call_operand.vmem [shape: f32[2,16,3], index: 1, kind: input, shape index: {}]
  %s2 = inlined_call_operand.vmem [shape: f32[2,3,16], index: 2, kind: input, shape index: {}]
  %s3 = inlined_call_operand.vmem [shape: f32[2,10,16], index: 3, kind: input, shape index: {}]
  %s4 = inlined_call_operand.vmem [shape: f32[16,16], index: 4, kind: input, shape index: {}]
  %s5 = inlined_call_operand.vmem [shape: s32[2,10,16], index: 5, kind: output, shape index: {0}]
  %s6 = inlined_call_operand.vmem [shape: f32[2,10,16], index: 6, kind: output, shape index: {1}]
  %7 = xla_tuple %s5, %s6
  %s8 = sld [smem:[#allocation0]]
  $region61: #{tpu_custom_call.1} parent=0
    _
  %s10 = ssub.s32 1, %s8
  %s11 = scalar_select 0, %s10, %s8
  %12 = sst [smem:[#allocation2]] %s0
  loop: start=0, step=1, limit=4
  $region2: #{tpu_custom_call.1} parent=0 // loop_pre_header
    _
  $region3: #{tpu_custom_call.1} parent=0 // loop_header
    %s14 = sphi 0, %s18
    %p15 = scmp.ge.s32.totalorder %s14, 4
    %s21 = sphi 0, %s33
    %s22 = sphi 0, %s29
    %s23 = sphi 0, %s21
    %s24 = sphi 0, %s22
    %s25 = sphi 0, %s23
    %s26 = sphi 0, %s24
    %s34 = sphi 0, %s34
    %s36 = sphi 0, %s34
    %s37 = sphi 0, %s36
    %s51 = sphi 0, %s37
    %s57 = sphi 0, %s59
    %s60 = sphi 0, %s57
    %s61 = sphi 0, %s60
    %s77 = sphi 0, %s61
    %s85 = sphi 0, %s87
    %s88 = sphi 0, %s85
    %s89 = sphi 0, %s88
    %s105 = sphi 0, %s89
    %s113 = sphi 0, %s115
    %s116 = sphi 0, %s113
    %s117 = sphi 0, %s116
    %s133 = sphi 0, %s117
    %s137 = sphi 0, %s137
    %s139 = sphi 0, %s137
    %s140 = sphi 0, %s139
    %s154 = sphi 0, %s140
    %s162 = sphi 0, %s164
    %s165 = sphi 0, %s162
    %s166 = sphi 0, %s165
    %s182 = sphi 0, %s166
    %s190 = sphi 0, %s192
    %s193 = sphi 0, %s190
    %s194 = sphi 0, %s193
    %s210 = sphi 0, %s194
  $region4: #{tpu_custom_call.1} parent=0 // loop_header_branch
    %17 = sbr.rel (%p15) target = $region8
  $region5: #{tpu_custom_call.1} parent=0 // loop_body
    %s19 = ssub.s32 %s14, 1
    %s20 = ssub.s32 %s14, 2
    %s27 = sadd.s32 1, %s22
    %p28 = scmp.ge.s32.totalorder %s27, 1
    %s29 = scalar_select %p28, 0, %s27
    %s30 = sadd.s32 1, %s21
    %s31 = scalar_select %p28, %s30, %s21
    %p32 = scmp.ge.s32.totalorder %s31, 2
    %s33 = scalar_select %p32, 0, %s31
    %s35 = sadd.s32 %s34, 1
    %p38 = scmp.eq.s32.totalorder %s14, 1
    %p39 = scmp.ne.s32.totalorder %s34, %s36
    %p40 = scmp.eq.s32.totalorder %s14, 0
    %p41 = por %p39, %p40
    %p42 = scmp.ne.s32.totalorder %s34, %s36
    %p43 = scmp.eq.s32.totalorder %s19, 1
    %p44 = por %p42, %p43
    %p45 = scmp.ne.s32.totalorder %s36, %s37
    %p46 = scmp.eq.s32.totalorder %s19, 0
    %p47 = por %p45, %p46
    %p48 = scmp.ne.s32.totalorder %s36, %s37
    %p49 = scmp.eq.s32.totalorder %s20, 1
    %p50 = por %p48, %p49
    %p52 = scmp.ne.s32.totalorder %s37, %s51
    %p53 = scmp.eq.s32.totalorder %s20, 0
    %p54 = por %p52, %p53
    %s55 = ssub.s32 %s21, %s33
    %p56 = scmp.eq.s32.totalorder %s55, 0
    %s58 = sadd.s32 %s57, 1
    %s59 = scalar_select %p56, %s57, %s58
    %p62 = pneg %p56
    %p63 = scmp.eq.s32.totalorder %s14, 1
    %p64 = por %p62, %p63
    %p65 = scmp.ne.s32.totalorder %s57, %s60
    %p66 = scmp.eq.s32.totalorder %s14, 0
    %p67 = por %p65, %p66
    %p68 = scmp.ne.s32.totalorder %s57, %s60
    %p69 = scmp.eq.s32.totalorder %s19, 1
    %p70 = por %p68, %p69
    %p71 = scmp.ne.s32.totalorder %s60, %s61
    %p72 = scmp.eq.s32.totalorder %s19, 0
    %p73 = por %p71, %p72
    %p74 = scmp.ne.s32.totalorder %s60, %s61
    %p75 = scmp.eq.s32.totalorder %s20, 1
    %p76 = por %p74, %p75
    %p78 = scmp.ne.s32.totalorder %s61, %s77
    %p79 = scmp.eq.s32.totalorder %s20, 0
    %p80 = por %p78, %p79
    %s81 = ssub.s32 %s21, %s33
    %s82 = ssub.s32 %s22, %s29
    %s83 = sor.u32 %s81, %s82
    %p84 = scmp.eq.s32.totalorder %s83, 0
    %s86 = sadd.s32 %s85, 1
    %s87 = scalar_select %p84, %s85, %s86
    %p90 = pneg %p84
    %p91 = scmp.eq.s32.totalorder %s14, 1
    %p92 = por %p90, %p91
    %p93 = scmp.ne.s32.totalorder %s85, %s88
    %p94 = scmp.eq.s32.totalorder %s14, 0
    %p95 = por %p93, %p94
    %p96 = scmp.ne.s32.totalorder %s85, %s88
    %p97 = scmp.eq.s32.totalorder %s19, 1
    %p98 = por %p96, %p97
    %p99 = scmp.ne.s32.totalorder %s88, %s89
    %p100 = scmp.eq.s32.totalorder %s19, 0
    %p101 = por %p99, %p100
    %p102 = scmp.ne.s32.totalorder %s88, %s89
    %p103 = scmp.eq.s32.totalorder %s20, 1
    %p104 = por %p102, %p103
    %p106 = scmp.ne.s32.totalorder %s89, %s105
    %p107 = scmp.eq.s32.totalorder %s20, 0
    %p108 = por %p106, %p107
    %s109 = ssub.s32 %s21, %s33
    %s110 = ssub.s32 %s22, %s29
    %s111 = sor.u32 %s109, %s110
    %p112 = scmp.eq.s32.totalorder %s111, 0
    %s114 = sadd.s32 %s113, 1
    %s115 = scalar_select %p112, %s113, %s114
    %p118 = pneg %p112
    %p119 = scmp.eq.s32.totalorder %s14, 1
    %p120 = por %p118, %p119
    %p121 = scmp.ne.s32.totalorder %s113, %s116
    %p122 = scmp.eq.s32.totalorder %s14, 0
    %p123 = por %p121, %p122
    %p124 = scmp.ne.s32.totalorder %s113, %s116
    %p125 = scmp.eq.s32.totalorder %s19, 1
    %p126 = por %p124, %p125
    %p127 = scmp.ne.s32.totalorder %s116, %s117
    %p128 = scmp.eq.s32.totalorder %s19, 0
    %p129 = por %p127, %p128
    %p130 = scmp.ne.s32.totalorder %s116, %s117
    %p131 = scmp.eq.s32.totalorder %s20, 1
    %p132 = por %p130, %p131
    %p134 = scmp.ne.s32.totalorder %s117, %s133
    %p135 = scmp.eq.s32.totalorder %s20, 0
    %p136 = por %p134, %p135
    %s138 = sadd.s32 %s137, 1
    %p141 = scmp.eq.s32.totalorder %s14, 1
    %p142 = scmp.ne.s32.totalorder %s137, %s139
    %p143 = scmp.eq.s32.totalorder %s14, 0
    %p144 = por %p142, %p143
    %p145 = scmp.ne.s32.totalorder %s137, %s139
    %p146 = scmp.eq.s32.totalorder %s19, 1
    %p147 = por %p145, %p146
    %p148 = scmp.ne.s32.totalorder %s139, %s140
    %p149 = scmp.eq.s32.totalorder %s19, 0
    %p150 = por %p148, %p149
    %p151 = scmp.ne.s32.totalorder %s139, %s140
    %p152 = scmp.eq.s32.totalorder %s20, 1
    %p153 = por %p151, %p152
    %p155 = scmp.ne.s32.totalorder %s140, %s154
    %p156 = scmp.eq.s32.totalorder %s20, 0
    %p157 = por %p155, %p156
    %s158 = ssub.s32 %s21, %s33
    %s159 = ssub.s32 %s22, %s29
    %s160 = sor.u32 %s158, %s159
    %p161 = scmp.eq.s32.totalorder %s160, 0
    %s163 = sadd.s32 %s162, 1
    %s164 = scalar_select %p161, %s162, %s163
    %p167 = pneg %p161
    %p168 = scmp.eq.s32.totalorder %s14, 1
    %p169 = por %p167, %p168
    %p170 = scmp.ne.s32.totalorder %s162, %s165
    %p171 = scmp.eq.s32.totalorder %s14, 0
    %p172 = por %p170, %p171
    %p173 = scmp.ne.s32.totalorder %s162, %s165
    %p174 = scmp.eq.s32.totalorder %s19, 1
    %p175 = por %p173, %p174
    %p176 = scmp.ne.s32.totalorder %s165, %s166
    %p177 = scmp.eq.s32.totalorder %s19, 0
    %p178 = por %p176, %p177
    %p179 = scmp.ne.s32.totalorder %s165, %s166
    %p180 = scmp.eq.s32.totalorder %s20, 1
    %p181 = por %p179, %p180
    %p183 = scmp.ne.s32.totalorder %s166, %s182
    %p184 = scmp.eq.s32.totalorder %s20, 0
    %p185 = por %p183, %p184
    %s186 = ssub.s32 %s21, %s33
    %s187 = ssub.s32 %s22, %s29
    %s188 = sor.u32 %s186, %s187
    %p189 = scmp.eq.s32.totalorder %s188, 0
    %s191 = sadd.s32 %s190, 1
    %s192 = scalar_select %p189, %s190, %s191
    %p195 = pneg %p189
    %p196 = scmp.eq.s32.totalorder %s14, 1
    %p197 = por %p195, %p196
    %p198 = scmp.ne.s32.totalorder %s190, %s193
    %p199 = scmp.eq.s32.totalorder %s14, 0
    %p200 = por %p198, %p199
    %p201 = scmp.ne.s32.totalorder %s190, %s193
    %p202 = scmp.eq.s32.totalorder %s19, 1
    %p203 = por %p201, %p202
    %p204 = scmp.ne.s32.totalorder %s193, %s194
    %p205 = scmp.eq.s32.totalorder %s19, 0
    %p206 = por %p204, %p205
    %p207 = scmp.ne.s32.totalorder %s193, %s194
    %p208 = scmp.eq.s32.totalorder %s20, 1
    %p209 = por %p207, %p208
    %p211 = scmp.ne.s32.totalorder %s194, %s210
    %p212 = scmp.eq.s32.totalorder %s20, 0
    %p213 = por %p211, %p212
    %p214 = scmp.le.s32.totalorder 1, %s14
    %p215 = scmp.lt.s32.totalorder %s14, 3
    %p216 = pnand %p214, %p215
    %p217 = pneg %p216
    // Predicated region
    $region9: #{tpu_custom_call.1} parent=5 // pred_check
      _
    $region10: #{tpu_custom_call.1} parent=5 // pred_check_branch
      %219 = sbr.rel (%p216) target = $region12
    $region11: #{tpu_custom_call.1} parent=5 // pred_region
      %s220 = ssub.s32 %s14, 1
      // Predicated region
      $region13: #{tpu_custom_call.1} parent=11 // pred_check
        %p221 = pneg %p47
      $region14: #{tpu_custom_call.1} parent=11 // pred_check_branch
        %223 = sbr.rel (%p221) target = $region16
      $region15: #{tpu_custom_call.1} parent=11 // pred_region
        _
      $region16: #{tpu_custom_call.1} parent=11 // pred_fallthru
        _
      // Predicated region
      $region17: #{tpu_custom_call.1} parent=11 // pred_check
        %p224 = pneg %p150
      $region18: #{tpu_custom_call.1} parent=11 // pred_check_branch
        %226 = sbr.rel (%p224) target = $region20
      $region19: #{tpu_custom_call.1} parent=11 // pred_region
        _
      $region20: #{tpu_custom_call.1} parent=11 // pred_fallthru
        _
    $region12: #{tpu_custom_call.1} parent=5 // pred_fallthru
      _
    %p227 = scmp.lt.s32.totalorder %s14, 2
    // Predicated region
    $region21: #{tpu_custom_call.1} parent=5 // pred_check
      %p228 = pneg %p227
    $region22: #{tpu_custom_call.1} parent=5 // pred_check_branch
      %230 = sbr.rel (%p228) target = $region24
    $region23: #{tpu_custom_call.1} parent=5 // pred_region
      // Predicated region
      $region25: #{tpu_custom_call.1} parent=23 // pred_check
        %p231 = pneg %p67
      $region26: #{tpu_custom_call.1} parent=23 // pred_check_branch
        %233 = sbr.rel (%p231) target = $region28
      $region27: #{tpu_custom_call.1} parent=23 // pred_region
        %p234 = scmp.lt.s32.totalorder %s21, 1
        %s235 = scalar_select %p234, %s21, 1
        %s236 = smul.addr %s235, 2
        %s237 = smul.addr %s236, 8
        %s238 = scalar_lea.vmem %s1, %s237
      $region28: #{tpu_custom_call.1} parent=23 // pred_fallthru
        _
      // Predicated region
      $region29: #{tpu_custom_call.1} parent=23 // pred_check
        %p239 = pneg %p95
      $region30: #{tpu_custom_call.1} parent=23 // pred_check_branch
        %241 = sbr.rel (%p239) target = $region32
      $region31: #{tpu_custom_call.1} parent=23 // pred_region
        %p242 = scmp.lt.s32.totalorder %s21, 1
        %s243 = scalar_select %p242, %s21, 1
        %p244 = scmp.lt.s32.totalorder %s22, 0
        %s245 = scalar_select %p244, %s22, 0
        %s246 = sadd.s32 %s245, %s243
        %s247 = smul.addr %s246, 4
        %s248 = scalar_lea.vmem %s2, %s247
      $region32: #{tpu_custom_call.1} parent=23 // pred_fallthru
        _
      // Predicated region
      $region33: #{tpu_custom_call.1} parent=23 // pred_check
        %p249 = pneg %p123
      $region34: #{tpu_custom_call.1} parent=23 // pred_check_branch
        %251 = sbr.rel (%p249) target = $region36
      $region35: #{tpu_custom_call.1} parent=23 // pred_region
        %p252 = scmp.lt.s32.totalorder %s21, 1
        %s253 = scalar_select %p252, %s21, 1
        %p254 = scmp.lt.s32.totalorder %s22, 0
        %s255 = scalar_select %p254, %s22, 0
        %s256 = smul.addr %s253, 2
        %s257 = sadd.s32 %s255, %s256
        %s258 = smul.addr %s257, 8
        %s259 = scalar_lea.vmem %s3, %s258
      $region36: #{tpu_custom_call.1} parent=23 // pred_fallthru
        _
    $region24: #{tpu_custom_call.1} parent=5 // pred_fallthru
      _
    %p260 = scmp.le.s32.totalorder 1, %s14
    %p261 = scmp.lt.s32.totalorder %s14, 3
    %p262 = pnand %p260, %p261
    %p263 = pneg %p262
    // Predicated region
    $region37: #{tpu_custom_call.1} parent=5 // pred_check
      _
    $region38: #{tpu_custom_call.1} parent=5 // pred_check_branch
      %265 = sbr.rel (%p262) target = $region40
    $region39: #{tpu_custom_call.1} parent=5 // pred_region
      %s266 = ssub.s32 %s14, 1
      %p267 = pneg %p47
      %p268 = pneg %p44
      %p269 = scmp.lt.s32.totalorder %s23, 1
      %s270 = scalar_select %p269, %s23, 1
      %s271 = smul.addr %s270, 2
      %s272 = smul.addr %s271, 8
      %s273 = scalar_lea.vmem %s1, %s272
      %p274 = pneg %p73
      %p275 = pneg %p70
      %p276 = scmp.lt.s32.totalorder %s23, 1
      %s277 = scalar_select %p276, %s23, 1
      %p278 = scmp.lt.s32.totalorder %s24, 0
      %s279 = scalar_select %p278, %s24, 0
      %s280 = sadd.s32 %s279, %s277
      %s281 = smul.addr %s280, 4
      %s282 = scalar_lea.vmem %s2, %s281
      %p283 = pneg %p101
      %p284 = pneg %p98
      %p285 = scmp.lt.s32.totalorder %s23, 1
      %s286 = scalar_select %p285, %s23, 1
      %p287 = scmp.lt.s32.totalorder %s24, 0
      %s288 = scalar_select %p287, %s24, 0
      %s289 = smul.addr %s286, 2
      %s290 = sadd.s32 %s288, %s289
      %s291 = smul.addr %s290, 8
      %s292 = scalar_lea.vmem %s3, %s291
      %p293 = pneg %p129
      %p294 = pneg %p126
      %p295 = pneg %p150
      %p296 = pneg %p147
      %p297 = pneg %p178
      %p298 = pneg %p175
      %p299 = scmp.lt.s32.totalorder %s23, 1
      %s300 = scalar_select %p299, %s23, 1
      %p301 = scmp.lt.s32.totalorder %s24, 0
      %s302 = scalar_select %p301, %s24, 0
      %s303 = smul.addr %s300, 2
      %s304 = sadd.s32 %s302, %s303
      %s305 = smul.addr %s304, 8
      %s306 = scalar_lea.vmem %s5, %s305
      %p307 = pneg %p206
      %p308 = pneg %p203
      %p309 = scmp.lt.s32.totalorder %s23, 1
      %s310 = scalar_select %p309, %s23, 1
      %p311 = scmp.lt.s32.totalorder %s24, 0
      %s312 = scalar_select %p311, %s24, 0
      %s313 = smul.addr %s310, 2
      %s314 = sadd.s32 %s312, %s313
      %s315 = smul.addr %s314, 8
      %s316 = scalar_lea.vmem %s6, %s315
      %p317 = scmp.lt.s32.totalorder %s23, 1
      %s318 = scalar_select %p317, %s23, 1
      %s319 = smul.addr %s318, 2
      %s320 = smul.addr %s319, 8
      %s321 = scalar_lea.vmem %s1, %s320
      %p322 = scmp.lt.s32.totalorder %s23, 1
      %s323 = scalar_select %p322, %s23, 1
      %p324 = scmp.lt.s32.totalorder %s24, 0
      %s325 = scalar_select %p324, %s24, 0
      %s326 = sadd.s32 %s325, %s323
      %s327 = smul.addr %s326, 4
      %s328 = scalar_lea.vmem %s2, %s327
      %p329 = scmp.lt.s32.totalorder %s23, 1
      %s330 = scalar_select %p329, %s23, 1
      %p331 = scmp.lt.s32.totalorder %s24, 0
      %s332 = scalar_select %p331, %s24, 0
      %s333 = smul.addr %s330, 2
      %s334 = sadd.s32 %s332, %s333
      %s335 = smul.addr %s334, 8
      %s336 = scalar_lea.vmem %s3, %s335
      %p337 = scmp.lt.s32.totalorder %s23, 1
      %s338 = scalar_select %p337, %s23, 1
      %p339 = scmp.lt.s32.totalorder %s24, 0
      %s340 = scalar_select %p339, %s24, 0
      %s341 = smul.addr %s338, 2
      %s342 = sadd.s32 %s340, %s341
      %s343 = smul.addr %s342, 8
      %s344 = scalar_lea.vmem %s5, %s343
      %p345 = scmp.lt.s32.totalorder %s23, 1
      %s346 = scalar_select %p345, %s23, 1
      %p347 = scmp.lt.s32.totalorder %s24, 0
      %s348 = scalar_select %p347, %s24, 0
      %s349 = smul.addr %s346, 2
      %s350 = sadd.s32 %s348, %s349
      %s351 = smul.addr %s350, 8
      %s352 = scalar_lea.vmem %s6, %s351
      %s353 = sld [smem:[#allocation2]]
      %s354 = smul.u32 %s24, 16
      %v355 = vld [vmem:[%s321] sm:$0xff]
      %v356 = vld [vmem:[%s321 + $0x8] sm:$0xff]
      %v357 = vld [vmem:[%s328] sm:$0x7]
      %359 = vset.pattern.permute.xlu0 0
      %360 = vperm.xlu0 %359, %v355
      %v361 = vpop.permute.xlu0 %360
      %364 = vset.pattern.permute.xlu0 0
      %365 = vperm.xlu0 %364, %v356
      %v366 = vpop.permute.xlu0 %365
      %v368 = vperm.slane %v357, 0
      %v369 = vsub.f32 %v361, %v368
      %v370 = vsub.f32 %v366, %v368
      %v371 = vmul.f32 %v369, %v369
      %v372 = vmul.f32 %v370, %v370
      %v373 = vadd.f32 %v371, 0.0
      %v374 = vadd.f32 %v372, 0.0
      %375 = vset.pattern.permute.xlu0 1
      %376 = vperm.xlu0 %375, %v355
      %v377 = vpop.permute.xlu0 %376
      %379 = vset.pattern.permute.xlu0 1
      %380 = vperm.xlu0 %379, %v356
      %v381 = vpop.permute.xlu0 %380
      %v383 = vperm.slane %v357, 1
      %v384 = vsub.f32 %v377, %v383
      %v385 = vsub.f32 %v381, %v383
      %v386 = vmul.f32 %v384, %v384
      %v387 = vmul.f32 %v385, %v385
      %v388 = vadd.f32 %v373, %v386
      %v389 = vadd.f32 %v374, %v387
      %390 = vset.pattern.permute.xlu0 2
      %391 = vperm.xlu0 %390, %v355
      %v392 = vpop.permute.xlu0 %391
      %394 = vset.pattern.permute.xlu0 2
      %395 = vperm.xlu0 %394, %v356
      %v396 = vpop.permute.xlu0 %395
      %v398 = vperm.slane %v357, 2
      %v399 = vsub.f32 %v392, %v398
      %v400 = vsub.f32 %v396, %v398
      %v401 = vmul.f32 %v399, %v399
      %v402 = vmul.f32 %v400, %v400
      %v403 = vadd.f32 %v388, %v401
      %v404 = vadd.f32 %v389, %v402
      %v405 = vrsqrt.pop %v403
      %v406 = vmul.f32 %v405, %v403
      %v407 = vmul.f32 %v406, %v405
      %v408 = vmul.f32 0.5, %v407
      %v409 = vsub.f32 1.5, %v408
      %v410 = vmul.f32 %v405, %v409
      %v411 = vmul.f32 %v403, %v410
      %vm412 = vcmp.eq.f32.partialorder %v403, inf
      %v413 = vsel %vm412, %v403, %v411
      %vm414 = vcmp.eq.f32.partialorder %v403, 0.0
      %v415 = vand.u32 %v403, 2147483648
      %v416 = vsel %vm414, %v415, %v413
      %v417 = vrsqrt.pop %v404
      %v418 = vmul.f32 %v417, %v404
      %v419 = vmul.f32 %v418, %v417
      %v420 = vmul.f32 0.5, %v419
      %v421 = vsub.f32 1.5, %v420
      %v422 = vmul.f32 %v417, %v421
      %v423 = vmul.f32 %v404, %v422
      %vm424 = vcmp.eq.f32.partialorder %v404, inf
      %v425 = vsel %vm424, %v404, %v423
      %vm426 = vcmp.eq.f32.partialorder %v404, 0.0
      %v427 = vand.u32 %v404, 2147483648
      %v428 = vsel %vm426, %v427, %v425
      %v429 = vlaneseq
      %v430 = vshrl.u32 %v429, 7
      %v431 = vadd.s32 %v430, 8
      %v432 = vlaneseq
      %v433 = vand.u32 %v432, 127
      %v434 = vstv %s354
      %v435 = vadd.s32 %v433, %v434
      %v436 = vstv %s353
      %v437 = vmul.f32 %v416, %v436
      %v438 = vmul.f32 %v428, %v436
      %v439 = vmul.f32 %v437, 1.442695
      %v440 = vpow.pop %v439
      %v441 = vmul.f32 %v438, 1.442695
      %v442 = vpow.pop %v441
      %vm443 = vcmp.eq.s32.totalorder %v430, %v435
      %vm444 = vcmp.eq.s32.totalorder %v431, %v435
      %v445 = vsel %vm443, 0.0, %v440
      %v446 = vsel %vm444, 0.0, %v442
      %v447 = vmul.f32 %v445, 1.442695
      %v448 = vpow.pop %v447
      %v449 = vmul.f32 %v446, 1.442695
      %v450 = vpow.pop %v449
      %vm451 = vcmask 130048
      %v452 = vsel %vm451, %v448, 0.0
      %v453 = vsel %vm451, %v450, 0.0
      %v454 = vadd.f32 %v452, %v453
      %v455 = vrot.slane %v454, 4
      %v456 = vadd.f32 %v454, %v455
      %v457 = vrot.slane %v456, 2
      %v458 = vadd.f32 %v456, %v457
      %v459 = vrot.slane %v458, 1
      %v460 = vadd.f32 %v458, %v459
      %v461 = vrcp.pop %v460
      %v462 = vmul.f32 %v448, %v461
      %v463 = vmul.f32 %v450, %v461
      %v464 = vld [vmem:[%s4] sm:$0xff]
      %v465 = vld [vmem:[%s4 + $0x8] sm:$0xff]
      %v467 = vsel %vm451, %v464, 0
      %v470 = vsel %vm451, %v465, 0
      %472 = vmatpush.msra.mxu0 0.0
      %473 = vmatpush.msra.mxu0 0.0
      %474 = vmatpush.msra.mxu0 0.0
      %475 = vmatpush.msra.mxu0 0.0
      %476 = vmatpush.msra.mxu0 0.0
      %477 = vmatpush.msra.mxu0 0.0
      %478 = vmatpush.msra.mxu0 0.0
      %479 = vmatpush.msra.mxu0 0.0
      %480 = vmatpush.msra.mxu0 0.0
      %481 = vmatpush.msra.mxu0 0.0
      %482 = vmatpush.msra.mxu0 0.0
      %483 = vmatpush.msra.mxu0 0.0
      %484 = vmatpush.msra.mxu0 0.0
      %485 = vmatpush.msra.mxu0 0.0
      %486 = vmatpush.msra.mxu0 %v463
      %487 = vmatpush.msra.mxu0 %v462
      %488 = vmatmul.f32.gmra.mxu0 %v467
      %v489 = vpop.f32.mrf.mxu0
      %v490 = vadd.f32 0.0, %v489
      %491 = vmatmul.f32.gmra.mxu0 %v470
      %v492 = vpop.f32.mrf.mxu0
      %v493 = vadd.f32 0.0, %v492
      %494 = vdwg.mxu0
      %v495 = vrot.slane %v490, 7
      %v496 = vrot.slane %v493, 7
      %vm497 = vcmp.lt.s32.totalorder %v430, 1
      %v498 = vsel %vm497, %v495, %v496
      %v499 = vsel %vm497, %v496, %v495
      %vm500 = vcmp.eq.s32.totalorder %v430, 0
      %vm501 = vcmp.eq.s32.totalorder %v431, 0
      %v502 = vsel %vm500, -1.0, %v499
      %v503 = vsel %vm501, -1.0, %v498
      %vm504 = vcmp.eq.s32.totalorder %v430, 15
      %vm505 = vcmp.eq.s32.totalorder %v431, 15
      %v506 = vsel %vm504, 2.0, %v490
      %v507 = vsel %vm505, 2.0, %v493
      %v508 = vld [vmem:[%s336] sm:$0x1]
      %v509 = vperm.slane %v508, 0
      %vm510 = vcmp.ge.f32.partialorder %v506, %v509
      %vm511 = vcmp.ge.f32.partialorder %v507, %v509
      %vm512 = vcmp.lt.f32.partialorder %v502, %v509
      %vm513 = vcmp.lt.f32.partialorder %v503, %v509
      %vm514 = vmand %vm510, %vm512
      %vm515 = vmand %vm511, %vm513
      %v516 = vsel %vm514, %v430, 0
      %v517 = vsel %vm515, %v431, 0
      %v518 = vsel %vm451, %v516, 0
      %v519 = vsel %vm451, %v517, 0
      %v520 = vadd.s32 %v518, %v519
      %v521 = vrot.slane %v520, 4
      %v522 = vadd.s32 %v520, %v521
      %v523 = vrot.slane %v522, 2
      %v524 = vadd.s32 %v522, %v523
      %v525 = vrot.slane %v524, 1
      %v526 = vadd.s32 %v524, %v525
      %vm527 = vcmask 122880
      %528 = vst.msk [vmem:[%s344] sm:$0x1] %vm527, %v526
      %v529 = vsel %vm514, %v445, 0.0
      %v530 = vsel %vm515, %v446, 0.0
      %v531 = vsel %vm451, %v529, 0.0
      %v532 = vsel %vm451, %v530, 0.0
      %v533 = vadd.f32 %v531, %v532
      %v534 = vrot.slane %v533, 4
      %v535 = vadd.f32 %v533, %v534
      %v536 = vrot.slane %v535, 2
      %v537 = vadd.f32 %v535, %v536
      %v538 = vrot.slane %v537, 1
      %v539 = vadd.f32 %v537, %v538
      %540 = vst.msk [vmem:[%s352] sm:$0x1] %vm527, %v539
      %v541 = vld [vmem:[%s336 + $0x1] sm:$0x1]
      %v542 = vperm.slane %v541, 0
      %vm543 = vcmp.ge.f32.partialorder %v506, %v542
      %vm544 = vcmp.ge.f32.partialorder %v507, %v542
      %vm545 = vcmp.lt.f32.partialorder %v502, %v542
      %vm546 = vcmp.lt.f32.partialorder %v503, %v542
      %vm547 = vmand %vm543, %vm545
      %vm548 = vmand %vm544, %vm546
      %v549 = vsel %vm547, %v430, 0
      %v550 = vsel %vm548, %v431, 0
      %v551 = vsel %vm451, %v549, 0
      %v552 = vsel %vm451, %v550, 0
      %v553 = vadd.s32 %v551, %v552
      %v554 = vrot.slane %v553, 4
      %v555 = vadd.s32 %v553, %v554
      %v556 = vrot.slane %v555, 2
      %v557 = vadd.s32 %v555, %v556
      %v558 = vrot.slane %v557, 1
      %v559 = vadd.s32 %v557, %v558
      %560 = vst.msk [vmem:[%s344 + $0x1] sm:$0x1] %vm527, %v559
      %v561 = vsel %vm547, %v445, 0.0
      %v562 = vsel %vm548, %v446, 0.0
      %v563 = vsel %vm451, %v561, 0.0
      %v564 = vsel %vm451, %v562, 0.0
      %v565 = vadd.f32 %v563, %v564
      %v566 = vrot.slane %v565, 4
      %v567 = vadd.f32 %v565, %v566
      %v568 = vrot.slane %v567, 2
      %v569 = vadd.f32 %v567, %v568
      %v570 = vrot.slane %v569, 1
      %v571 = vadd.f32 %v569, %v570
      %572 = vst.msk [vmem:[%s352 + $0x1] sm:$0x1] %vm527, %v571
      %v573 = vld [vmem:[%s336 + $0x2] sm:$0x1]
      %v574 = vperm.slane %v573, 0
      %vm575 = vcmp.ge.f32.partialorder %v506, %v574
      %vm576 = vcmp.ge.f32.partialorder %v507, %v574
      %vm577 = vcmp.lt.f32.partialorder %v502, %v574
      %vm578 = vcmp.lt.f32.partialorder %v503, %v574
      %vm579 = vmand %vm575, %vm577
      %vm580 = vmand %vm576, %vm578
      %v581 = vsel %vm579, %v430, 0
      %v582 = vsel %vm580, %v431, 0
      %v583 = vsel %vm451, %v581, 0
      %v584 = vsel %vm451, %v582, 0
      %v585 = vadd.s32 %v583, %v584
      %v586 = vrot.slane %v585, 4
      %v587 = vadd.s32 %v585, %v586
      %v588 = vrot.slane %v587, 2
      %v589 = vadd.s32 %v587, %v588
      %v590 = vrot.slane %v589, 1
      %v591 = vadd.s32 %v589, %v590
      %592 = vst.msk [vmem:[%s344 + $0x2] sm:$0x1] %vm527, %v591
      %v593 = vsel %vm579, %v445, 0.0
      %v594 = vsel %vm580, %v446, 0.0
      %v595 = vsel %vm451, %v593, 0.0
      %v596 = vsel %vm451, %v594, 0.0
      %v597 = vadd.f32 %v595, %v596
      %v598 = vrot.slane %v597, 4
      %v599 = vadd.f32 %v597, %v598
      %v600 = vrot.slane %v599, 2
      %v601 = vadd.f32 %v599, %v600
      %v602 = vrot.slane %v601, 1
      %v603 = vadd.f32 %v601, %v602
      %604 = vst.msk [vmem:[%s352 + $0x2] sm:$0x1] %vm527, %v603
      %v605 = vld [vmem:[%s336 + $0x3] sm:$0x1]
      %v606 = vperm.slane %v605, 0
      %vm607 = vcmp.ge.f32.partialorder %v506, %v606
      %vm608 = vcmp.ge.f32.partialorder %v507, %v606
      %vm609 = vcmp.lt.f32.partialorder %v502, %v606
      %vm610 = vcmp.lt.f32.partialorder %v503, %v606
      %vm611 = vmand %vm607, %vm609
      %vm612 = vmand %vm608, %vm610
      %v613 = vsel %vm611, %v430, 0
      %v614 = vsel %vm612, %v431, 0
      %v615 = vsel %vm451, %v613, 0
      %v616 = vsel %vm451, %v614, 0
      %v617 = vadd.s32 %v615, %v616
      %v618 = vrot.slane %v617, 4
      %v619 = vadd.s32 %v617, %v618
      %v620 = vrot.slane %v619, 2
      %v621 = vadd.s32 %v619, %v620
      %v622 = vrot.slane %v621, 1
      %v623 = vadd.s32 %v621, %v622
      %624 = vst.msk [vmem:[%s344 + $0x3] sm:$0x1] %vm527, %v623
      %v625 = vsel %vm611, %v445, 0.0
      %v626 = vsel %vm612, %v446, 0.0
      %v627 = vsel %vm451, %v625, 0.0
      %v628 = vsel %vm451, %v626, 0.0
      %v629 = vadd.f32 %v627, %v628
      %v630 = vrot.slane %v629, 4
      %v631 = vadd.f32 %v629, %v630
      %v632 = vrot.slane %v631, 2
      %v633 = vadd.f32 %v631, %v632
      %v634 = vrot.slane %v633, 1
      %v635 = vadd.f32 %v633, %v634
      %636 = vst.msk [vmem:[%s352 + $0x3] sm:$0x1] %vm527, %v635
      %v637 = vld [vmem:[%s336 + $0x4] sm:$0x1]
      %v638 = vperm.slane %v637, 0
      %vm639 = vcmp.ge.f32.partialorder %v506, %v638
      %vm640 = vcmp.ge.f32.partialorder %v507, %v638
      %vm641 = vcmp.lt.f32.partialorder %v502, %v638
      %vm642 = vcmp.lt.f32.partialorder %v503, %v638
      %vm643 = vmand %vm639, %vm641
      %vm644 = vmand %vm640, %vm642
      %v645 = vsel %vm643, %v430, 0
      %v646 = vsel %vm644, %v431, 0
      %v647 = vsel %vm451, %v645, 0
      %v648 = vsel %vm451, %v646, 0
      %v649 = vadd.s32 %v647, %v648
      %v650 = vrot.slane %v649, 4
      %v651 = vadd.s32 %v649, %v650
      %v652 = vrot.slane %v651, 2
      %v653 = vadd.s32 %v651, %v652
      %v654 = vrot.slane %v653, 1
      %v655 = vadd.s32 %v653, %v654
      %656 = vst.msk [vmem:[%s344 + $0x4] sm:$0x1] %vm527, %v655
      %v657 = vsel %vm643, %v445, 0.0
      %v658 = vsel %vm644, %v446, 0.0
      %v659 = vsel %vm451, %v657, 0.0
      %v660 = vsel %vm451, %v658, 0.0
      %v661 = vadd.f32 %v659, %v660
      %v662 = vrot.slane %v661, 4
      %v663 = vadd.f32 %v661, %v662
      %v664 = vrot.slane %v663, 2
      %v665 = vadd.f32 %v663, %v664
      %v666 = vrot.slane %v665, 1
      %v667 = vadd.f32 %v665, %v666
      %668 = vst.msk [vmem:[%s352 + $0x4] sm:$0x1] %vm527, %v667
      %v669 = vld [vmem:[%s336 + $0x5] sm:$0x1]
      %v670 = vperm.slane %v669, 0
      %vm671 = vcmp.ge.f32.partialorder %v506, %v670
      %vm672 = vcmp.ge.f32.partialorder %v507, %v670
      %vm673 = vcmp.lt.f32.partialorder %v502, %v670
      %vm674 = vcmp.lt.f32.partialorder %v503, %v670
      %vm675 = vmand %vm671, %vm673
      %vm676 = vmand %vm672, %vm674
      %v677 = vsel %vm675, %v430, 0
      %v678 = vsel %vm676, %v431, 0
      %v679 = vsel %vm451, %v677, 0
      %v680 = vsel %vm451, %v678, 0
      %v681 = vadd.s32 %v679, %v680
      %v682 = vrot.slane %v681, 4
      %v683 = vadd.s32 %v681, %v682
      %v684 = vrot.slane %v683, 2
      %v685 = vadd.s32 %v683, %v684
      %v686 = vrot.slane %v685, 1
      %v687 = vadd.s32 %v685, %v686
      %688 = vst.msk [vmem:[%s344 + $0x5] sm:$0x1] %vm527, %v687
      %v689 = vsel %vm675, %v445, 0.0
      %v690 = vsel %vm676, %v446, 0.0
      %v691 = vsel %vm451, %v689, 0.0
      %v692 = vsel %vm451, %v690, 0.0
      %v693 = vadd.f32 %v691, %v692
      %v694 = vrot.slane %v693, 4
      %v695 = vadd.f32 %v693, %v694
      %v696 = vrot.slane %v695, 2
      %v697 = vadd.f32 %v695, %v696
      %v698 = vrot.slane %v697, 1
      %v699 = vadd.f32 %v697, %v698
      %700 = vst.msk [vmem:[%s352 + $0x5] sm:$0x1] %vm527, %v699
      %v701 = vld [vmem:[%s336 + $0x6] sm:$0x1]
      %v702 = vperm.slane %v701, 0
      %vm703 = vcmp.ge.f32.partialorder %v506, %v702
      %vm704 = vcmp.ge.f32.partialorder %v507, %v702
      %vm705 = vcmp.lt.f32.partialorder %v502, %v702
      %vm706 = vcmp.lt.f32.partialorder %v503, %v702
      %vm707 = vmand %vm703, %vm705
      %vm708 = vmand %vm704, %vm706
      %v709 = vsel %vm707, %v430, 0
      %v710 = vsel %vm708, %v431, 0
      %v711 = vsel %vm451, %v709, 0
      %v712 = vsel %vm451, %v710, 0
      %v713 = vadd.s32 %v711, %v712
      %v714 = vrot.slane %v713, 4
      %v715 = vadd.s32 %v713, %v714
      %v716 = vrot.slane %v715, 2
      %v717 = vadd.s32 %v715, %v716
      %v718 = vrot.slane %v717, 1
      %v719 = vadd.s32 %v717, %v718
      %720 = vst.msk [vmem:[%s344 + $0x6] sm:$0x1] %vm527, %v719
      %v721 = vsel %vm707, %v445, 0.0
      %v722 = vsel %vm708, %v446, 0.0
      %v723 = vsel %vm451, %v721, 0.0
      %v724 = vsel %vm451, %v722, 0.0
      %v725 = vadd.f32 %v723, %v724
      %v726 = vrot.slane %v725, 4
      %v727 = vadd.f32 %v725, %v726
      %v728 = vrot.slane %v727, 2
      %v729 = vadd.f32 %v727, %v728
      %v730 = vrot.slane %v729, 1
      %v731 = vadd.f32 %v729, %v730
      %732 = vst.msk [vmem:[%s352 + $0x6] sm:$0x1] %vm527, %v731
      %v733 = vld [vmem:[%s336 + $0x7] sm:$0x1]
      %v734 = vperm.slane %v733, 0
      %vm735 = vcmp.ge.f32.partialorder %v506, %v734
      %vm736 = vcmp.ge.f32.partialorder %v507, %v734
      %vm737 = vcmp.lt.f32.partialorder %v502, %v734
      %vm738 = vcmp.lt.f32.partialorder %v503, %v734
      %vm739 = vmand %vm735, %vm737
      %vm740 = vmand %vm736, %vm738
      %v741 = vsel %vm739, %v430, 0
      %v742 = vsel %vm740, %v431, 0
      %v743 = vsel %vm451, %v741, 0
      %v744 = vsel %vm451, %v742, 0
      %v745 = vadd.s32 %v743, %v744
      %v746 = vrot.slane %v745, 4
      %v747 = vadd.s32 %v745, %v746
      %v748 = vrot.slane %v747, 2
      %v749 = vadd.s32 %v747, %v748
      %v750 = vrot.slane %v749, 1
      %v751 = vadd.s32 %v749, %v750
      %752 = vst.msk [vmem:[%s344 + $0x7] sm:$0x1] %vm527, %v751
      %v753 = vsel %vm739, %v445, 0.0
      %v754 = vsel %vm740, %v446, 0.0
      %v755 = vsel %vm451, %v753, 0.0
      %v756 = vsel %vm451, %v754, 0.0
      %v757 = vadd.f32 %v755, %v756
      %v758 = vrot.slane %v757, 4
      %v759 = vadd.f32 %v757, %v758
      %v760 = vrot.slane %v759, 2
      %v761 = vadd.f32 %v759, %v760
      %v762 = vrot.slane %v761, 1
      %v763 = vadd.f32 %v761, %v762
      %764 = vst.msk [vmem:[%s352 + $0x7] sm:$0x1] %vm527, %v763
      %v765 = vld [vmem:[%s336 + $0x8] sm:$0x1]
      %v766 = vperm.slane %v765, 0
      %vm767 = vcmp.ge.f32.partialorder %v506, %v766
      %vm768 = vcmp.ge.f32.partialorder %v507, %v766
      %vm769 = vcmp.lt.f32.partialorder %v502, %v766
      %vm770 = vcmp.lt.f32.partialorder %v503, %v766
      %vm771 = vmand %vm767, %vm769
      %vm772 = vmand %vm768, %vm770
      %v773 = vsel %vm771, %v430, 0
      %v774 = vsel %vm772, %v431, 0
      %v775 = vsel %vm451, %v773, 0
      %v776 = vsel %vm451, %v774, 0
      %v777 = vadd.s32 %v775, %v776
      %v778 = vrot.slane %v777, 4
      %v779 = vadd.s32 %v777, %v778
      %v780 = vrot.slane %v779, 2
      %v781 = vadd.s32 %v779, %v780
      %v782 = vrot.slane %v781, 1
      %v783 = vadd.s32 %v781, %v782
      %784 = vst.msk [vmem:[%s344 + $0x8] sm:$0x1] %vm527, %v783
      %v785 = vsel %vm771, %v445, 0.0
      %v786 = vsel %vm772, %v446, 0.0
      %v787 = vsel %vm451, %v785, 0.0
      %v788 = vsel %vm451, %v786, 0.0
      %v789 = vadd.f32 %v787, %v788
      %v790 = vrot.slane %v789, 4
      %v791 = vadd.f32 %v789, %v790
      %v792 = vrot.slane %v791, 2
      %v793 = vadd.f32 %v791, %v792
      %v794 = vrot.slane %v793, 1
      %v795 = vadd.f32 %v793, %v794
      %796 = vst.msk [vmem:[%s352 + $0x8] sm:$0x1] %vm527, %v795
      %v797 = vld [vmem:[%s336 + $0x9] sm:$0x1]
      %v798 = vperm.slane %v797, 0
      %vm799 = vcmp.ge.f32.partialorder %v506, %v798
      %vm800 = vcmp.ge.f32.partialorder %v507, %v798
      %vm801 = vcmp.lt.f32.partialorder %v502, %v798
      %vm802 = vcmp.lt.f32.partialorder %v503, %v798
      %vm803 = vmand %vm799, %vm801
      %vm804 = vmand %vm800, %vm802
      %v805 = vsel %vm803, %v430, 0
      %v806 = vsel %vm804, %v431, 0
      %v807 = vsel %vm451, %v805, 0
      %v808 = vsel %vm451, %v806, 0
      %v809 = vadd.s32 %v807, %v808
      %v810 = vrot.slane %v809, 4
      %v811 = vadd.s32 %v809, %v810
      %v812 = vrot.slane %v811, 2
      %v813 = vadd.s32 %v811, %v812
      %v814 = vrot.slane %v813, 1
      %v815 = vadd.s32 %v813, %v814
      %816 = vst.msk [vmem:[%s344 + $0x9] sm:$0x1] %vm527, %v815
      %v817 = vsel %vm803, %v445, 0.0
      %v818 = vsel %vm804, %v446, 0.0
      %v819 = vsel %vm451, %v817, 0.0
      %v820 = vsel %vm451, %v818, 0.0
      %v821 = vadd.f32 %v819, %v820
      %v822 = vrot.slane %v821, 4
      %v823 = vadd.f32 %v821, %v822
      %v824 = vrot.slane %v823, 2
      %v825 = vadd.f32 %v823, %v824
      %v826 = vrot.slane %v825, 1
      %v827 = vadd.f32 %v825, %v826
      %828 = vst.msk [vmem:[%s352 + $0x9] sm:$0x1] %vm527, %v827
      %p829 = scmp.lt.s32.totalorder %s23, 1
      %s830 = scalar_select %p829, %s23, 1
      %p831 = scmp.lt.s32.totalorder %s24, 0
      %s832 = scalar_select %p831, %s24, 0
      %s833 = smul.addr %s830, 2
      %s834 = sadd.s32 %s832, %s833
      %s835 = smul.addr %s834, 8
      %s836 = scalar_lea.vmem %s5, %s835
      %p837 = scmp.lt.s32.totalorder %s23, 1
      %s838 = scalar_select %p837, %s23, 1
      %p839 = scmp.lt.s32.totalorder %s24, 0
      %s840 = scalar_select %p839, %s24, 0
      %s841 = smul.addr %s838, 2
      %s842 = sadd.s32 %s840, %s841
      %s843 = smul.addr %s842, 8
      %s844 = scalar_lea.vmem %s6, %s843
      // Predicated region
      $region41: #{tpu_custom_call.1} parent=39 // pred_check
        %p845 = pneg %p175
      $region42: #{tpu_custom_call.1} parent=39 // pred_check_branch
        %847 = sbr.rel (%p845) target = $region44
      $region43: #{tpu_custom_call.1} parent=39 // pred_region
        _
      $region44: #{tpu_custom_call.1} parent=39 // pred_fallthru
        _
      // Predicated region
      $region45: #{tpu_custom_call.1} parent=39 // pred_check
        %p848 = pneg %p203
      $region46: #{tpu_custom_call.1} parent=39 // pred_check_branch
        %850 = sbr.rel (%p848) target = $region48
      $region47: #{tpu_custom_call.1} parent=39 // pred_region
        _
      $region48: #{tpu_custom_call.1} parent=39 // pred_fallthru
        _
    $region40: #{tpu_custom_call.1} parent=5 // pred_fallthru
      _
    %p851 = scmp.le.s32.totalorder 2, %s14
    // Predicated region
    $region49: #{tpu_custom_call.1} parent=5 // pred_check
      %p852 = pneg %p851
    $region50: #{tpu_custom_call.1} parent=5 // pred_check_branch
      %854 = sbr.rel (%p852) target = $region52
    $region51: #{tpu_custom_call.1} parent=5 // pred_region
      %s855 = ssub.s32 %s14, 2
      // Predicated region
      $region53: #{tpu_custom_call.1} parent=51 // pred_check
        %p856 = pneg %p181
      $region54: #{tpu_custom_call.1} parent=51 // pred_check_branch
        %858 = sbr.rel (%p856) target = $region56
      $region55: #{tpu_custom_call.1} parent=51 // pred_region
        %p859 = scmp.lt.s32.totalorder %s25, 1
        %s860 = scalar_select %p859, %s25, 1
        %p861 = scmp.lt.s32.totalorder %s26, 0
        %s862 = scalar_select %p861, %s26, 0
        %s863 = smul.addr %s860, 2
        %s864 = sadd.s32 %s862, %s863
        %s865 = smul.addr %s864, 8
        %s866 = scalar_lea.vmem %s5, %s865
      $region56: #{tpu_custom_call.1} parent=51 // pred_fallthru
        _
      // Predicated region
      $region57: #{tpu_custom_call.1} parent=51 // pred_check
        %p867 = pneg %p209
      $region58: #{tpu_custom_call.1} parent=51 // pred_check_branch
        %869 = sbr.rel (%p867) target = $region60
      $region59: #{tpu_custom_call.1} parent=51 // pred_region
        %p870 = scmp.lt.s32.totalorder %s25, 1
        %s871 = scalar_select %p870, %s25, 1
        %p872 = scmp.lt.s32.totalorder %s26, 0
        %s873 = scalar_select %p872, %s26, 0
        %s874 = smul.addr %s871, 2
        %s875 = sadd.s32 %s873, %s874
        %s876 = smul.addr %s875, 8
        %s877 = scalar_lea.vmem %s6, %s876
      $region60: #{tpu_custom_call.1} parent=51 // pred_fallthru
        _
    $region52: #{tpu_custom_call.1} parent=5 // pred_fallthru
      _
  $region6: #{tpu_custom_call.1} parent=0 // loop_footer
    %s18 = sadd.s32 1, %s14
  $region7: #{tpu_custom_call.1} parent=0 // loop_footer_branch
    %13 = sbr.rel target = $region3
  $region8: #{tpu_custom_call.1} parent=0 // loop_exit
    _

</llo_original>
